<compile_context>
chip_gen: v6e
topology: v6e:2x2x1
jax: 0.10.0
libtpu: 0.0.40
codegen_flags: <defaults>
</compile_context>

<pallas_src>
import math
import functools

import jax
import jax.numpy as jnp
import numpy as np
from jax.experimental import pallas as pl
from jax.experimental.pallas import tpu as pltpu


# ----------------------------- in-kernel math -------------------------------

def _layer_norm(x, w, b, eps=1e-5):
    # x: (rows, C) f32, w/b: (1, C) f32
    mean = jnp.mean(x, axis=-1, keepdims=True)
    var = jnp.mean((x - mean) ** 2, axis=-1, keepdims=True)
    return (x - mean) * jax.lax.rsqrt(var + eps) * w + b


def _gelu_tanh(x):
    c = math.sqrt(2.0 / math.pi)
    return 0.5 * x * (1.0 + jnp.tanh(c * (x + 0.044715 * x * x * x)))


# ------------------------------- kernel --------------------------------------

def transformer_block_kernel(
    x_ref,                       # (1, T, C)  f32  (full sequence; revisited across q-tiles)
    ln1_w_ref, ln1_b_ref,        # (1, C) f32
    w_q_ref, b_q_ref,            # (C, C) bf16 / (1, C) f32
    w_kv_ref, b_kv_ref,          # (C, 2C) bf16 / (1, 2C) f32
    w_o_ref, b_o_ref,            # (C, C) bf16 / (1, C) f32
    ln2_w_ref, ln2_b_ref,        # (1, C) f32
    w_fc_ref, b_fc_ref,          # (C, 4C) bf16 / (1, 4C) f32
    w_p2_ref, b_p2_ref,          # (4C, C) bf16 / (1, C) f32
    out_ref,                     # (1, TQ, C)
    k_scr, v_scr,                # (H, T, hd) bf16 scratch, persistent across q-tiles
    *, n_head, q_tile,
):
    T = x_ref.shape[1]
    C = x_ref.shape[2]
    H = n_head
    hd = C // H
    TQ = q_tile
    scale = 1.0 / math.sqrt(hd)

    j = pl.program_id(1)

    # ---- K/V projection for the whole sequence: once per batch element -----
    @pl.when(j == 0)
    def _():
        x_full = x_ref[0]                                          # (T, C) f32
        h1 = _layer_norm(x_full, ln1_w_ref[...], ln1_b_ref[...])   # f32
        kv = jnp.dot(h1.astype(jnp.bfloat16), w_kv_ref[...],
                     preferred_element_type=jnp.float32) + b_kv_ref[...]
        k = kv[:, :C].reshape(T, H, hd).transpose(1, 0, 2)         # (H, T, hd) f32
        v = kv[:, C:].reshape(T, H, hd).transpose(1, 0, 2)
        k_scr[...] = k.astype(jnp.bfloat16)
        v_scr[...] = v.astype(jnp.bfloat16)

    # ---- per q-tile attention + MLP -----------------------------------------
    row0 = pl.multiple_of(j * TQ, TQ)
    x_q = x_ref[0, pl.ds(row0, TQ), :]                             # (TQ, C) f32

    h1q = _layer_norm(x_q, ln1_w_ref[...], ln1_b_ref[...])
    q = jnp.dot(h1q.astype(jnp.bfloat16), w_q_ref[...],
                preferred_element_type=jnp.float32) + b_q_ref[...]  # (TQ, C) f32
    q3 = q.reshape(TQ, H, hd).transpose(1, 0, 2).astype(jnp.bfloat16)  # (H, TQ, hd)

    # head-batched scores, contracting last axes (no explicit k.T transpose)
    s = jnp.einsum("hqd,hkd->hqk", q3, k_scr[...],
                   preferred_element_type=jnp.float32) * scale     # (H, TQ, T) f32

    # additive causal mask (built once in f32, broadcast over heads)
    q_idx = row0 + jax.lax.broadcasted_iota(jnp.int32, (TQ, T), 0)
    k_idx = jax.lax.broadcasted_iota(jnp.int32, (TQ, T), 1)
    mask_add = jnp.where(k_idx <= q_idx, 0.0, -1e30).astype(jnp.float32)
    s = s + mask_add                                               # broadcast (TQ,T) -> (H,TQ,T)

    s_max = jnp.max(s, axis=-1, keepdims=True)
    p = jnp.exp(s - s_max)
    p = p * pl.reciprocal(jnp.sum(p, axis=-1, keepdims=True), approx=True)

    y3 = jnp.einsum("hqk,hkd->hqd", p.astype(jnp.bfloat16), v_scr[...],
                    preferred_element_type=jnp.float32)            # (H, TQ, hd) f32
    y = y3.transpose(1, 0, 2).reshape(TQ, C)                       # (TQ, C) f32

    attn = jnp.dot(y.astype(jnp.bfloat16), w_o_ref[...],
                   preferred_element_type=jnp.float32) + b_o_ref[...]
    x1 = x_q + attn

    h2 = _layer_norm(x1, ln2_w_ref[...], ln2_b_ref[...])
    hid = jnp.dot(h2.astype(jnp.bfloat16), w_fc_ref[...],
                  preferred_element_type=jnp.float32) + b_fc_ref[...]
    hid = _gelu_tanh(hid)
    mlp = jnp.dot(hid.astype(jnp.bfloat16), w_p2_ref[...],
                  preferred_element_type=jnp.float32) + b_p2_ref[...]

    out_ref[0] = (x1 + mlp).astype(out_ref.dtype)


# ------------------------------- wrapper -------------------------------------

def transformer_block(x, params, n_head, q_tile=128):
    (ln1_w, ln1_b, w_qkv, b_qkv, w_o, b_o,
     ln2_w, ln2_b, w_fc, b_fc, w_p2, b_p2) = params
    B, T, C = x.shape
    assert C % n_head == 0
    TQ = min(q_tile, T)
    assert T % TQ == 0
    NQ = T // TQ
    hd = C // n_head

    # split the fused QKV weight: Q is needed per q-tile, K/V once per sequence
    w_q, w_kv = w_qkv[:, :C], w_qkv[:, C:]
    b_q, b_kv = b_qkv[:, :C], b_qkv[:, C:]

    # bf16 operands for every MXU matmul (f32 accumulation happens in-kernel)
    bf = lambda w: w.astype(jnp.bfloat16)
    w_q_b, w_kv_b, w_o_b, w_fc_b, w_p2_b = bf(w_q), bf(w_kv), bf(w_o), bf(w_fc), bf(w_p2)

    const = lambda shape: pl.BlockSpec(shape, lambda b, j: (0,) * len(shape))

    in_specs = [
        pl.BlockSpec((1, T, C), lambda b, j: (b, 0, 0)),   # x (revisited over j)
        const((1, C)), const((1, C)),                      # ln1 w, b
        const((C, C)), const((1, C)),                      # w_q, b_q
        const((C, 2 * C)), const((1, 2 * C)),              # w_kv, b_kv
        const((C, C)), const((1, C)),                      # w_o, b_o
        const((1, C)), const((1, C)),                      # ln2 w, b
        const((C, 4 * C)), const((1, 4 * C)),              # w_fc, b_fc
        const((4 * C, C)), const((1, C)),                  # w_p2, b_p2
    ]

    kernel = functools.partial(transformer_block_kernel,
                               n_head=n_head, q_tile=TQ)

    return pl.pallas_call(
        kernel,
        out_shape=jax.ShapeDtypeStruct((B, T, C), x.dtype),
        grid=(B, NQ),
        in_specs=in_specs,
        out_specs=pl.BlockSpec((1, TQ, C), lambda b, j: (b, j, 0)),
        scratch_shapes=[pltpu.VMEM((n_head, T, hd), jnp.bfloat16),
                        pltpu.VMEM((n_head, T, hd), jnp.bfloat16)],
        compiler_params=pltpu.CompilerParams(
            dimension_semantics=("parallel", "arbitrary"),
            vmem_limit_bytes=48 * 1024 * 1024),
    )(x, ln1_w, ln1_b, w_q_b, b_q, w_kv_b, b_kv, w_o_b, b_o,
      ln2_w, ln2_b, w_fc_b, b_fc, w_p2_b, b_p2)


# --------------------------- pure-JAX reference ------------------------------

def reference_block(x, params, n_head):
    (ln1_w, ln1_b, w_qkv, b_qkv, w_o, b_o,
     ln2_w, ln2_b, w_fc, b_fc, w_p2, b_p2) = params
    B, T, C = x.shape
    hd = C // n_head

    def ln(z, w, b):
        m = jnp.mean(z, -1, keepdims=True)
        v = jnp.mean((z - m) ** 2, -1, keepdims=True)
        return (z - m) * jax.lax.rsqrt(v + 1e-5) * w + b

    h1 = ln(x, ln1_w, ln1_b)
    qkv = h1 @ w_qkv + b_qkv
    q, k, v = jnp.split(qkv, 3, axis=-1)
    q = q.reshape(B, T, n_head, hd).transpose(0, 2, 1, 3)
    k = k.reshape(B, T, n_head, hd).transpose(0, 2, 1, 3)
    v = v.reshape(B, T, n_head, hd).transpose(0, 2, 1, 3)
    s = jnp.einsum("bhqd,bhkd->bhqk", q, k) / math.sqrt(hd)
    mask = jnp.tril(jnp.ones((T, T), bool))
    s = jnp.where(mask, s, -jnp.inf)
    p = jax.nn.softmax(s, axis=-1)
    y = jnp.einsum("bhqk,bhkd->bhqd", p, v).transpose(0, 2, 1, 3).reshape(B, T, C)
    x1 = x + y @ w_o + b_o

    h2 = ln(x1, ln2_w, ln2_b)
    c = math.sqrt(2.0 / math.pi)
    hid = h2 @ w_fc + b_fc
    hid = 0.5 * hid * (1.0 + jnp.tanh(c * (hid + 0.044715 * hid ** 3)))
    return x1 + hid @ w_p2 + b_p2


# ---------------------------------- main --------------------------------------

if __name__ == "__main__":
    B, T, C, n_head = 2, 8, 32, 4   # batch, seq, n_embd, heads

    key = jax.random.PRNGKey(0)
    keys = jax.random.split(key, 8)

    x = jax.random.normal(keys[0], (B, T, C), dtype=jnp.float32)

    std = 0.02
    ln1_w = jnp.ones((1, C), jnp.float32)
    ln1_b = jnp.zeros((1, C), jnp.float32)
    ln2_w = jnp.ones((1, C), jnp.float32)
    ln2_b = jnp.zeros((1, C), jnp.float32)
    w_qkv = std * jax.random.normal(keys[1], (C, 3 * C), jnp.float32)
    b_qkv = jnp.zeros((1, 3 * C), jnp.float32)
    w_o   = std * jax.random.normal(keys[2], (C, C), jnp.float32)
    b_o   = jnp.zeros((1, C), jnp.float32)
    w_fc  = std * jax.random.normal(keys[3], (C, 4 * C), jnp.float32)
    b_fc  = jnp.zeros((1, 4 * C), jnp.float32)
    w_p2  = std * jax.random.normal(keys[4], (4 * C, C), jnp.float32)
    b_p2  = jnp.zeros((1, C), jnp.float32)

    params = (ln1_w, ln1_b, w_qkv, b_qkv, w_o, b_o,
              ln2_w, ln2_b, w_fc, b_fc, w_p2, b_p2)

    out = transformer_block(x, params, n_head)
    out = jax.block_until_ready(out)

    ref = reference_block(x, params, n_head)
    # bf16 matmul operands + approx reciprocal -> loosened tolerance vs f32 ref
    np.testing.assert_allclose(np.asarray(out), np.asarray(ref),
                               rtol=2e-2, atol=2e-2)

    print("KERNEL_OK")
</pallas_src>

<mosaic_0001>
module attributes {stable_mosaic.version = 11 : i64} {
  func.func @transformer_block_kernel(%arg0: i32, %arg1: i32, %arg2: memref<1x8x32xf32, #tpu.memory_space<vmem>>, %arg3: memref<1x32xf32, #tpu.memory_space<vmem>>, %arg4: memref<1x32xf32, #tpu.memory_space<vmem>>, %arg5: memref<32x32xbf16, #tpu.memory_space<vmem>>, %arg6: memref<1x32xf32, #tpu.memory_space<vmem>>, %arg7: memref<32x64xbf16, #tpu.memory_space<vmem>>, %arg8: memref<1x64xf32, #tpu.memory_space<vmem>>, %arg9: memref<32x32xbf16, #tpu.memory_space<vmem>>, %arg10: memref<1x32xf32, #tpu.memory_space<vmem>>, %arg11: memref<1x32xf32, #tpu.memory_space<vmem>>, %arg12: memref<1x32xf32, #tpu.memory_space<vmem>>, %arg13: memref<32x128xbf16, #tpu.memory_space<vmem>>, %arg14: memref<1x128xf32, #tpu.memory_space<vmem>>, %arg15: memref<128x32xbf16, #tpu.memory_space<vmem>>, %arg16: memref<1x32xf32, #tpu.memory_space<vmem>>, %arg17: memref<1x8x32xf32, #tpu.memory_space<vmem>>, %arg18: memref<4x8x8xbf16, #tpu.memory_space<vmem>>, %arg19: memref<4x8x8xbf16, #tpu.memory_space<vmem>>) attributes {dimension_semantics = [#tpu.dimension_semantics<parallel>, #tpu.dimension_semantics<arbitrary>], iteration_bounds = array<i64: 2, 1>, scalar_prefetch = 0 : i64, scratch_operands = 2 : i64, tpu.core_type = #tpu.core_type<tc>, window_params = [{transform_indices = @transform_0, window_bounds = array<i64: 1, 8, 32>}, {pipeline_mode = #tpu.pipeline_mode<synchronous>, transform_indices = @transform_1, window_bounds = array<i64: 1, 32>}, {pipeline_mode = #tpu.pipeline_mode<synchronous>, transform_indices = @transform_2, window_bounds = array<i64: 1, 32>}, {pipeline_mode = #tpu.pipeline_mode<synchronous>, transform_indices = @transform_3, window_bounds = array<i64: 32, 32>}, {pipeline_mode = #tpu.pipeline_mode<synchronous>, transform_indices = @transform_4, window_bounds = array<i64: 1, 32>}, {pipeline_mode = #tpu.pipeline_mode<synchronous>, transform_indices = @transform_5, window_bounds = array<i64: 32, 64>}, {pipeline_mode = #tpu.pipeline_mode<synchronous>, transform_indices = @transform_6, window_bounds = array<i64: 1, 64>}, {pipeline_mode = #tpu.pipeline_mode<synchronous>, transform_indices = @transform_7, window_bounds = array<i64: 32, 32>}, {pipeline_mode = #tpu.pipeline_mode<synchronous>, transform_indices = @transform_8, window_bounds = array<i64: 1, 32>}, {pipeline_mode = #tpu.pipeline_mode<synchronous>, transform_indices = @transform_9, window_bounds = array<i64: 1, 32>}, {pipeline_mode = #tpu.pipeline_mode<synchronous>, transform_indices = @transform_10, window_bounds = array<i64: 1, 32>}, {pipeline_mode = #tpu.pipeline_mode<synchronous>, transform_indices = @transform_11, window_bounds = array<i64: 32, 128>}, {pipeline_mode = #tpu.pipeline_mode<synchronous>, transform_indices = @transform_12, window_bounds = array<i64: 1, 128>}, {pipeline_mode = #tpu.pipeline_mode<synchronous>, transform_indices = @transform_13, window_bounds = array<i64: 128, 32>}, {pipeline_mode = #tpu.pipeline_mode<synchronous>, transform_indices = @transform_14, window_bounds = array<i64: 1, 32>}, {transform_indices = @transform_15, window_bounds = array<i64: 1, 8, 32>}]} {
    %c0_i32 = arith.constant 0 : i32
    %0 = arith.cmpi eq, %arg1, %c0_i32 : i32
    %1 = arith.extui %0 : i1 to i32
    %c0_i32_0 = arith.constant 0 : i32
    %2 = arith.cmpi ne, %1, %c0_i32_0 : i32
    scf.if %2 {
      %c0_59 = arith.constant 0 : index
      %c0_60 = arith.constant 0 : index
      %c0_61 = arith.constant 0 : index
      %131 = vector.load %arg2[%c0_59, %c0_60, %c0_61] : memref<1x8x32xf32, #tpu.memory_space<vmem>>, vector<1x8x32xf32>
      %132 = vector.shape_cast %131 : vector<1x8x32xf32> to vector<8x32xf32>
      %c0_62 = arith.constant 0 : index
      %c0_63 = arith.constant 0 : index
      %133 = vector.load %arg3[%c0_62, %c0_63] : memref<1x32xf32, #tpu.memory_space<vmem>>, vector<1x32xf32>
      %c0_64 = arith.constant 0 : index
      %c0_65 = arith.constant 0 : index
      %134 = vector.load %arg4[%c0_64, %c0_65] : memref<1x32xf32, #tpu.memory_space<vmem>>, vector<1x32xf32>
      %cst_66 = arith.constant dense<0.000000e+00> : vector<8xf32>
      %135 = vector.multi_reduction <add>, %132, %cst_66 [1] : vector<8x32xf32> to vector<8xf32>
      %136 = vector.shape_cast %135 : vector<8xf32> to vector<8x1xf32>
      %cst_67 = arith.constant 3.200000e+01 : f32
      %137 = vector.broadcast %cst_67 : f32 to vector<8x1xf32>
      %138 = arith.divf %136, %137 : vector<8x1xf32>
      %139 = vector.broadcast %138 : vector<8x1xf32> to vector<8x32xf32>
      %140 = arith.subf %132, %139 : vector<8x32xf32>
      %141 = arith.mulf %140, %140 : vector<8x32xf32>
      %cst_68 = arith.constant dense<0.000000e+00> : vector<8xf32>
      %142 = vector.multi_reduction <add>, %141, %cst_68 [1] : vector<8x32xf32> to vector<8xf32>
      %143 = vector.shape_cast %142 : vector<8xf32> to vector<8x1xf32>
      %cst_69 = arith.constant 3.200000e+01 : f32
      %144 = vector.broadcast %cst_69 : f32 to vector<8x1xf32>
      %145 = arith.divf %143, %144 : vector<8x1xf32>
      %146 = vector.broadcast %138 : vector<8x1xf32> to vector<8x32xf32>
      %147 = arith.subf %132, %146 : vector<8x32xf32>
      %cst_70 = arith.constant 9.99999974E-6 : f32
      %148 = vector.broadcast %cst_70 : f32 to vector<8x1xf32>
      %149 = arith.addf %145, %148 : vector<8x1xf32>
      %150 = math.rsqrt %149 : vector<8x1xf32>
      %151 = vector.broadcast %150 : vector<8x1xf32> to vector<8x32xf32>
      %152 = arith.mulf %147, %151 : vector<8x32xf32>
      %153 = vector.broadcast %133 : vector<1x32xf32> to vector<8x32xf32>
      %154 = arith.mulf %152, %153 : vector<8x32xf32>
      %155 = vector.broadcast %134 : vector<1x32xf32> to vector<8x32xf32>
      %156 = arith.addf %154, %155 : vector<8x32xf32>
      %157 = arith.truncf %156 : vector<8x32xf32> to vector<8x32xbf16>
      %c0_71 = arith.constant 0 : index
      %c0_72 = arith.constant 0 : index
      %158 = vector.load %arg7[%c0_71, %c0_72] : memref<32x64xbf16, #tpu.memory_space<vmem>>, vector<32x64xbf16>
      %cst_73 = arith.constant dense<0.000000e+00> : vector<8x64xf32>
      %159 = tpu.matmul %157, %158, %cst_73 {dimension_numbers = #tpu.dot_dimension_numbers<[1], [0], [0], [1], [0, 0, 1, 1], [], []>} : vector<8x32xbf16>, vector<32x64xbf16>, vector<8x64xf32> -> vector<8x64xf32>
      %c0_74 = arith.constant 0 : index
      %c0_75 = arith.constant 0 : index
      %160 = vector.load %arg8[%c0_74, %c0_75] : memref<1x64xf32, #tpu.memory_space<vmem>>, vector<1x64xf32>
      %161 = vector.broadcast %160 : vector<1x64xf32> to vector<8x64xf32>
      %162 = arith.addf %159, %161 : vector<8x64xf32>
      %163 = vector.extract_strided_slice %162 {offsets = [0, 0], sizes = [8, 32], strides = [1, 1]} : vector<8x64xf32> to vector<8x32xf32>
      %164 = vector.shape_cast %163 : vector<8x32xf32> to vector<8x4x8xf32>
      %165 = tpu.transpose %164, [1, 0, 2] : vector<8x4x8xf32> -> vector<4x8x8xf32>
      %166 = vector.extract_strided_slice %162 {offsets = [0, 32], sizes = [8, 32], strides = [1, 1]} : vector<8x64xf32> to vector<8x32xf32>
      %167 = vector.shape_cast %166 : vector<8x32xf32> to vector<8x4x8xf32>
      %168 = tpu.transpose %167, [1, 0, 2] : vector<8x4x8xf32> -> vector<4x8x8xf32>
      %169 = arith.truncf %165 : vector<4x8x8xf32> to vector<4x8x8xbf16>
      %c0_76 = arith.constant 0 : index
      %c0_77 = arith.constant 0 : index
      %c0_78 = arith.constant 0 : index
      %170 = vector.load %arg18[%c0_76, %c0_77, %c0_78] : memref<4x8x8xbf16, #tpu.memory_space<vmem>>, vector<4x8x8xbf16>
      tpu.vector_store %arg18[%c0_76, %c0_77, %c0_78], %169 {strides = array<i32>} : memref<4x8x8xbf16, #tpu.memory_space<vmem>>, vector<4x8x8xbf16>,
      %171 = arith.truncf %168 : vector<4x8x8xf32> to vector<4x8x8xbf16>
      %c0_79 = arith.constant 0 : index
      %c0_80 = arith.constant 0 : index
      %c0_81 = arith.constant 0 : index
      %172 = vector.load %arg19[%c0_79, %c0_80, %c0_81] : memref<4x8x8xbf16, #tpu.memory_space<vmem>>, vector<4x8x8xbf16>
      tpu.vector_store %arg19[%c0_79, %c0_80, %c0_81], %171 {strides = array<i32>} : memref<4x8x8xbf16, #tpu.memory_space<vmem>>, vector<4x8x8xbf16>,
    } else {
    }
    %c8_i32 = arith.constant 8 : i32
    %3 = arith.muli %arg1, %c8_i32 : i32
    %4 = tpu.assume_multiple %3, 8 : i32
    %c0 = arith.constant 0 : index
    %5 = arith.index_cast %4 : i32 to index
    %c0_1 = arith.constant 0 : index
    %6 = vector.load %arg2[%c0, %5, %c0_1] : memref<1x8x32xf32, #tpu.memory_space<vmem>>, vector<1x8x32xf32>
    %7 = vector.shape_cast %6 : vector<1x8x32xf32> to vector<8x32xf32>
    %c0_2 = arith.constant 0 : index
    %c0_3 = arith.constant 0 : index
    %8 = vector.load %arg3[%c0_2, %c0_3] : memref<1x32xf32, #tpu.memory_space<vmem>>, vector<1x32xf32>
    %c0_4 = arith.constant 0 : index
    %c0_5 = arith.constant 0 : index
    %9 = vector.load %arg4[%c0_4, %c0_5] : memref<1x32xf32, #tpu.memory_space<vmem>>, vector<1x32xf32>
    %cst = arith.constant dense<0.000000e+00> : vector<8xf32>
    %10 = vector.multi_reduction <add>, %7, %cst [1] : vector<8x32xf32> to vector<8xf32>
    %11 = vector.shape_cast %10 : vector<8xf32> to vector<8x1xf32>
    %cst_6 = arith.constant 3.200000e+01 : f32
    %12 = vector.broadcast %cst_6 : f32 to vector<8x1xf32>
    %13 = arith.divf %11, %12 : vector<8x1xf32>
    %14 = vector.broadcast %13 : vector<8x1xf32> to vector<8x32xf32>
    %15 = arith.subf %7, %14 : vector<8x32xf32>
    %16 = arith.mulf %15, %15 : vector<8x32xf32>
    %cst_7 = arith.constant dense<0.000000e+00> : vector<8xf32>
    %17 = vector.multi_reduction <add>, %16, %cst_7 [1] : vector<8x32xf32> to vector<8xf32>
    %18 = vector.shape_cast %17 : vector<8xf32> to vector<8x1xf32>
    %cst_8 = arith.constant 3.200000e+01 : f32
    %19 = vector.broadcast %cst_8 : f32 to vector<8x1xf32>
    %20 = arith.divf %18, %19 : vector<8x1xf32>
    %21 = vector.broadcast %13 : vector<8x1xf32> to vector<8x32xf32>
    %22 = arith.subf %7, %21 : vector<8x32xf32>
    %cst_9 = arith.constant 9.99999974E-6 : f32
    %23 = vector.broadcast %cst_9 : f32 to vector<8x1xf32>
    %24 = arith.addf %20, %23 : vector<8x1xf32>
    %25 = math.rsqrt %24 : vector<8x1xf32>
    %26 = vector.broadcast %25 : vector<8x1xf32> to vector<8x32xf32>
    %27 = arith.mulf %22, %26 : vector<8x32xf32>
    %28 = vector.broadcast %8 : vector<1x32xf32> to vector<8x32xf32>
    %29 = arith.mulf %27, %28 : vector<8x32xf32>
    %30 = vector.broadcast %9 : vector<1x32xf32> to vector<8x32xf32>
    %31 = arith.addf %29, %30 : vector<8x32xf32>
    %32 = arith.truncf %31 : vector<8x32xf32> to vector<8x32xbf16>
    %c0_10 = arith.constant 0 : index
    %c0_11 = arith.constant 0 : index
    %33 = vector.load %arg5[%c0_10, %c0_11] : memref<32x32xbf16, #tpu.memory_space<vmem>>, vector<32x32xbf16>
    %cst_12 = arith.constant dense<0.000000e+00> : vector<8x32xf32>
    %34 = tpu.matmul %32, %33, %cst_12 {dimension_numbers = #tpu.dot_dimension_numbers<[1], [0], [0], [1], [0, 0, 1, 1], [], []>} : vector<8x32xbf16>, vector<32x32xbf16>, vector<8x32xf32> -> vector<8x32xf32>
    %c0_13 = arith.constant 0 : index
    %c0_14 = arith.constant 0 : index
    %35 = vector.load %arg6[%c0_13, %c0_14] : memref<1x32xf32, #tpu.memory_space<vmem>>, vector<1x32xf32>
    %36 = vector.broadcast %35 : vector<1x32xf32> to vector<8x32xf32>
    %37 = arith.addf %34, %36 : vector<8x32xf32>
    %38 = vector.shape_cast %37 : vector<8x32xf32> to vector<8x4x8xf32>
    %39 = tpu.transpose %38, [1, 0, 2] : vector<8x4x8xf32> -> vector<4x8x8xf32>
    %40 = arith.truncf %39 : vector<4x8x8xf32> to vector<4x8x8xbf16>
    %c0_15 = arith.constant 0 : index
    %c0_16 = arith.constant 0 : index
    %c0_17 = arith.constant 0 : index
    %41 = vector.load %arg18[%c0_15, %c0_16, %c0_17] : memref<4x8x8xbf16, #tpu.memory_space<vmem>>, vector<4x8x8xbf16>
    "tpu.trace_start"() <{level = 10 : i32, message = "hqd,hkd->hqk"}> : () -> ()
    %cst_18 = arith.constant dense<0.000000e+00> : vector<4x8x8xf32>
    %42 = tpu.matmul %40, %41, %cst_18 {dimension_numbers = #tpu.dot_dimension_numbers<[2], [2], [1], [1], [0, 0, 0, 1, 1, 1], [0], [0]>} : vector<4x8x8xbf16>, vector<4x8x8xbf16>, vector<4x8x8xf32> -> vector<4x8x8xf32>
    "tpu.trace_stop"() : () -> ()
    %cst_19 = arith.constant 0.353553385 : f32
    %43 = vector.broadcast %cst_19 : f32 to vector<4x8x8xf32>
    %44 = arith.mulf %42, %43 : vector<4x8x8xf32>
    %45 = tpu.iota {dimensions = array<i32: 0>} : vector<8x8xi32>
    %46 = vector.broadcast %4 : i32 to vector<8x8xi32>
    %47 = arith.addi %46, %45 : vector<8x8xi32>
    %48 = tpu.iota {dimensions = array<i32: 1>} : vector<8x8xi32>
    %49 = arith.cmpi sle, %48, %47 : vector<8x8xi32>
    %cst_20 = arith.constant 0.000000e+00 : f32
    %cst_21 = arith.constant -1.000000e+30 : f32
    %50 = vector.broadcast %cst_20 : f32 to vector<8x8xf32>
    %51 = vector.broadcast %cst_21 : f32 to vector<8x8xf32>
    %52 = arith.select %49, %50, %51 : vector<8x8xi1>, vector<8x8xf32>
    %53 = vector.shape_cast %52 : vector<8x8xf32> to vector<1x8x8xf32>
    %54 = vector.broadcast %53 : vector<1x8x8xf32> to vector<4x8x8xf32>
    %55 = arith.addf %44, %54 : vector<4x8x8xf32>
    %cst_22 = arith.constant dense<0xFF800000> : vector<4x8xf32>
    %56 = vector.multi_reduction <maximumf>, %55, %cst_22 [2] : vector<4x8x8xf32> to vector<4x8xf32>
    %57 = vector.shape_cast %56 : vector<4x8xf32> to vector<4x8x1xf32>
    %58 = vector.broadcast %57 : vector<4x8x1xf32> to vector<4x8x8xf32>
    %59 = arith.subf %55, %58 : vector<4x8x8xf32>
    %60 = math.exp %59 : vector<4x8x8xf32>
    %cst_23 = arith.constant dense<0.000000e+00> : vector<4x8xf32>
    %61 = vector.multi_reduction <add>, %60, %cst_23 [2] : vector<4x8x8xf32> to vector<4x8xf32>
    %62 = vector.shape_cast %61 : vector<4x8xf32> to vector<4x8x1xf32>
    %63 = tpu.reciprocal %62 {approx = true} : vector<4x8x1xf32> -> vector<4x8x1xf32>
    %64 = vector.broadcast %63 : vector<4x8x1xf32> to vector<4x8x8xf32>
    %65 = arith.mulf %60, %64 : vector<4x8x8xf32>
    %66 = arith.truncf %65 : vector<4x8x8xf32> to vector<4x8x8xbf16>
    %c0_24 = arith.constant 0 : index
    %c0_25 = arith.constant 0 : index
    %c0_26 = arith.constant 0 : index
    %67 = vector.load %arg19[%c0_24, %c0_25, %c0_26] : memref<4x8x8xbf16, #tpu.memory_space<vmem>>, vector<4x8x8xbf16>
    "tpu.trace_start"() <{level = 10 : i32, message = "hqk,hkd->hqd"}> : () -> ()
    %cst_27 = arith.constant dense<0.000000e+00> : vector<4x8x8xf32>
    %68 = tpu.matmul %66, %67, %cst_27 {dimension_numbers = #tpu.dot_dimension_numbers<[2], [1], [1], [2], [0, 0, 0, 1, 1, 2], [0], [0]>} : vector<4x8x8xbf16>, vector<4x8x8xbf16>, vector<4x8x8xf32> -> vector<4x8x8xf32>
    "tpu.trace_stop"() : () -> ()
    %69 = tpu.transpose %68, [1, 0, 2] : vector<4x8x8xf32> -> vector<8x4x8xf32>
    %70 = vector.shape_cast %69 : vector<8x4x8xf32> to vector<8x32xf32>
    %71 = arith.truncf %70 : vector<8x32xf32> to vector<8x32xbf16>
    %c0_28 = arith.constant 0 : index
    %c0_29 = arith.constant 0 : index
    %72 = vector.load %arg9[%c0_28, %c0_29] : memref<32x32xbf16, #tpu.memory_space<vmem>>, vector<32x32xbf16>
    %cst_30 = arith.constant dense<0.000000e+00> : vector<8x32xf32>
    %73 = tpu.matmul %71, %72, %cst_30 {dimension_numbers = #tpu.dot_dimension_numbers<[1], [0], [0], [1], [0, 0, 1, 1], [], []>} : vector<8x32xbf16>, vector<32x32xbf16>, vector<8x32xf32> -> vector<8x32xf32>
    %c0_31 = arith.constant 0 : index
    %c0_32 = arith.constant 0 : index
    %74 = vector.load %arg10[%c0_31, %c0_32] : memref<1x32xf32, #tpu.memory_space<vmem>>, vector<1x32xf32>
    %75 = vector.broadcast %74 : vector<1x32xf32> to vector<8x32xf32>
    %76 = arith.addf %73, %75 : vector<8x32xf32>
    %77 = arith.addf %7, %76 : vector<8x32xf32>
    %c0_33 = arith.constant 0 : index
    %c0_34 = arith.constant 0 : index
    %78 = vector.load %arg11[%c0_33, %c0_34] : memref<1x32xf32, #tpu.memory_space<vmem>>, vector<1x32xf32>
    %c0_35 = arith.constant 0 : index
    %c0_36 = arith.constant 0 : index
    %79 = vector.load %arg12[%c0_35, %c0_36] : memref<1x32xf32, #tpu.memory_space<vmem>>, vector<1x32xf32>
    %cst_37 = arith.constant dense<0.000000e+00> : vector<8xf32>
    %80 = vector.multi_reduction <add>, %77, %cst_37 [1] : vector<8x32xf32> to vector<8xf32>
    %81 = vector.shape_cast %80 : vector<8xf32> to vector<8x1xf32>
    %cst_38 = arith.constant 3.200000e+01 : f32
    %82 = vector.broadcast %cst_38 : f32 to vector<8x1xf32>
    %83 = arith.divf %81, %82 : vector<8x1xf32>
    %84 = vector.broadcast %83 : vector<8x1xf32> to vector<8x32xf32>
    %85 = arith.subf %77, %84 : vector<8x32xf32>
    %86 = arith.mulf %85, %85 : vector<8x32xf32>
    %cst_39 = arith.constant dense<0.000000e+00> : vector<8xf32>
    %87 = vector.multi_reduction <add>, %86, %cst_39 [1] : vector<8x32xf32> to vector<8xf32>
    %88 = vector.shape_cast %87 : vector<8xf32> to vector<8x1xf32>
    %cst_40 = arith.constant 3.200000e+01 : f32
    %89 = vector.broadcast %cst_40 : f32 to vector<8x1xf32>
    %90 = arith.divf %88, %89 : vector<8x1xf32>
    %91 = vector.broadcast %83 : vector<8x1xf32> to vector<8x32xf32>
    %92 = arith.subf %77, %91 : vector<8x32xf32>
    %cst_41 = arith.constant 9.99999974E-6 : f32
    %93 = vector.broadcast %cst_41 : f32 to vector<8x1xf32>
    %94 = arith.addf %90, %93 : vector<8x1xf32>
    %95 = math.rsqrt %94 : vector<8x1xf32>
    %96 = vector.broadcast %95 : vector<8x1xf32> to vector<8x32xf32>
    %97 = arith.mulf %92, %96 : vector<8x32xf32>
    %98 = vector.broadcast %78 : vector<1x32xf32> to vector<8x32xf32>
    %99 = arith.mulf %97, %98 : vector<8x32xf32>
    %100 = vector.broadcast %79 : vector<1x32xf32> to vector<8x32xf32>
    %101 = arith.addf %99, %100 : vector<8x32xf32>
    %102 = arith.truncf %101 : vector<8x32xf32> to vector<8x32xbf16>
    %c0_42 = arith.constant 0 : index
    %c0_43 = arith.constant 0 : index
    %103 = vector.load %arg13[%c0_42, %c0_43] : memref<32x128xbf16, #tpu.memory_space<vmem>>, vector<32x128xbf16>
    %cst_44 = arith.constant dense<0.000000e+00> : vector<8x128xf32>
    %104 = tpu.matmul %102, %103, %cst_44 {dimension_numbers = #tpu.dot_dimension_numbers<[1], [0], [0], [1], [0, 0, 1, 1], [], []>} : vector<8x32xbf16>, vector<32x128xbf16>, vector<8x128xf32> -> vector<8x128xf32>
    %c0_45 = arith.constant 0 : index
    %c0_46 = arith.constant 0 : index
    %105 = vector.load %arg14[%c0_45, %c0_46] : memref<1x128xf32, #tpu.memory_space<vmem>>, vector<1x128xf32>
    %106 = vector.broadcast %105 : vector<1x128xf32> to vector<8x128xf32>
    %107 = arith.addf %104, %106 : vector<8x128xf32>
    %cst_47 = arith.constant 5.000000e-01 : f32
    %108 = vector.broadcast %cst_47 : f32 to vector<8x128xf32>
    %109 = arith.mulf %108, %107 : vector<8x128xf32>
    %cst_48 = arith.constant 4.471500e-02 : f32
    %110 = vector.broadcast %cst_48 : f32 to vector<8x128xf32>
    %111 = arith.mulf %110, %107 : vector<8x128xf32>
    %112 = arith.mulf %111, %107 : vector<8x128xf32>
    %113 = arith.mulf %112, %107 : vector<8x128xf32>
    %114 = arith.addf %107, %113 : vector<8x128xf32>
    %cst_49 = arith.constant 0.797884583 : f32
    %115 = vector.broadcast %cst_49 : f32 to vector<8x128xf32>
    %116 = arith.mulf %115, %114 : vector<8x128xf32>
    %117 = math.tanh %116 : vector<8x128xf32>
    %cst_50 = arith.constant 1.000000e+00 : f32
    %118 = vector.broadcast %cst_50 : f32 to vector<8x128xf32>
    %119 = arith.addf %118, %117 : vector<8x128xf32>
    %120 = arith.mulf %109, %119 : vector<8x128xf32>
    %121 = arith.truncf %120 : vector<8x128xf32> to vector<8x128xbf16>
    %c0_51 = arith.constant 0 : index
    %c0_52 = arith.constant 0 : index
    %122 = vector.load %arg15[%c0_51, %c0_52] : memref<128x32xbf16, #tpu.memory_space<vmem>>, vector<128x32xbf16>
    %cst_53 = arith.constant dense<0.000000e+00> : vector<8x32xf32>
    %123 = tpu.matmul %121, %122, %cst_53 {dimension_numbers = #tpu.dot_dimension_numbers<[1], [0], [0], [1], [0, 0, 1, 1], [], []>} : vector<8x128xbf16>, vector<128x32xbf16>, vector<8x32xf32> -> vector<8x32xf32>
    %c0_54 = arith.constant 0 : index
    %c0_55 = arith.constant 0 : index
    %124 = vector.load %arg16[%c0_54, %c0_55] : memref<1x32xf32, #tpu.memory_space<vmem>>, vector<1x32xf32>
    %125 = vector.broadcast %124 : vector<1x32xf32> to vector<8x32xf32>
    %126 = arith.addf %123, %125 : vector<8x32xf32>
    %127 = arith.addf %77, %126 : vector<8x32xf32>
    %c0_56 = arith.constant 0 : index
    %c0_57 = arith.constant 0 : index
    %c0_58 = arith.constant 0 : index
    %128 = vector.load %arg17[%c0_56, %c0_57, %c0_58] : memref<1x8x32xf32, #tpu.memory_space<vmem>>, vector<1x8x32xf32>
    %129 = vector.shape_cast %128 : vector<1x8x32xf32> to vector<8x32xf32>
    %130 = vector.shape_cast %127 : vector<8x32xf32> to vector<1x8x32xf32>
    tpu.vector_store %arg17[%c0_56, %c0_57, %c0_58], %130 {strides = array<i32>} : memref<1x8x32xf32, #tpu.memory_space<vmem>>, vector<1x8x32xf32>,
    return
  }
  func.func @transform_0(%arg0: i32, %arg1: i32) -> (i32, i32, i32) {
    %c0_i32 = arith.constant 0 : i32
    %c0_i32_0 = arith.constant 0 : i32
    %c0_i32_1 = arith.constant 0 : i32
    return %arg0, %c0_i32, %c0_i32_0 : i32, i32, i32
  }
  func.func @transform_1(%arg0: i32, %arg1: i32) -> (i32, i32) {
    %c0_i32 = arith.constant 0 : i32
    %c0_i32_0 = arith.constant 0 : i32
    %c0_i32_1 = arith.constant 0 : i32
    return %c0_i32, %c0_i32_0 : i32, i32
  }
  func.func @transform_2(%arg0: i32, %arg1: i32) -> (i32, i32) {
    %c0_i32 = arith.constant 0 : i32
    %c0_i32_0 = arith.constant 0 : i32
    %c0_i32_1 = arith.constant 0 : i32
    return %c0_i32, %c0_i32_0 : i32, i32
  }
  func.func @transform_3(%arg0: i32, %arg1: i32) -> (i32, i32) {
    %c0_i32 = arith.constant 0 : i32
    %c0_i32_0 = arith.constant 0 : i32
    %c0_i32_1 = arith.constant 0 : i32
    return %c0_i32, %c0_i32_0 : i32, i32
  }
  func.func @transform_4(%arg0: i32, %arg1: i32) -> (i32, i32) {
    %c0_i32 = arith.constant 0 : i32
    %c0_i32_0 = arith.constant 0 : i32
    %c0_i32_1 = arith.constant 0 : i32
    return %c0_i32, %c0_i32_0 : i32, i32
  }
  func.func @transform_5(%arg0: i32, %arg1: i32) -> (i32, i32) {
    %c0_i32 = arith.constant 0 : i32
    %c0_i32_0 = arith.constant 0 : i32
    %c0_i32_1 = arith.constant 0 : i32
    return %c0_i32, %c0_i32_0 : i32, i32
  }
  func.func @transform_6(%arg0: i32, %arg1: i32) -> (i32, i32) {
    %c0_i32 = arith.constant 0 : i32
    %c0_i32_0 = arith.constant 0 : i32
    %c0_i32_1 = arith.constant 0 : i32
    return %c0_i32, %c0_i32_0 : i32, i32
  }
  func.func @transform_7(%arg0: i32, %arg1: i32) -> (i32, i32) {
    %c0_i32 = arith.constant 0 : i32
    %c0_i32_0 = arith.constant 0 : i32
    %c0_i32_1 = arith.constant 0 : i32
    return %c0_i32, %c0_i32_0 : i32, i32
  }
  func.func @transform_8(%arg0: i32, %arg1: i32) -> (i32, i32) {
    %c0_i32 = arith.constant 0 : i32
    %c0_i32_0 = arith.constant 0 : i32
    %c0_i32_1 = arith.constant 0 : i32
    return %c0_i32, %c0_i32_0 : i32, i32
  }
  func.func @transform_9(%arg0: i32, %arg1: i32) -> (i32, i32) {
    %c0_i32 = arith.constant 0 : i32
    %c0_i32_0 = arith.constant 0 : i32
    %c0_i32_1 = arith.constant 0 : i32
    return %c0_i32, %c0_i32_0 : i32, i32
  }
  func.func @transform_10(%arg0: i32, %arg1: i32) -> (i32, i32) {
    %c0_i32 = arith.constant 0 : i32
    %c0_i32_0 = arith.constant 0 : i32
    %c0_i32_1 = arith.constant 0 : i32
    return %c0_i32, %c0_i32_0 : i32, i32
  }
  func.func @transform_11(%arg0: i32, %arg1: i32) -> (i32, i32) {
    %c0_i32 = arith.constant 0 : i32
    %c0_i32_0 = arith.constant 0 : i32
    %c0_i32_1 = arith.constant 0 : i32
    return %c0_i32, %c0_i32_0 : i32, i32
  }
  func.func @transform_12(%arg0: i32, %arg1: i32) -> (i32, i32) {
    %c0_i32 = arith.constant 0 : i32
    %c0_i32_0 = arith.constant 0 : i32
    %c0_i32_1 = arith.constant 0 : i32
    return %c0_i32, %c0_i32_0 : i32, i32
  }
  func.func @transform_13(%arg0: i32, %arg1: i32) -> (i32, i32) {
    %c0_i32 = arith.constant 0 : i32
    %c0_i32_0 = arith.constant 0 : i32
    %c0_i32_1 = arith.constant 0 : i32
    return %c0_i32, %c0_i32_0 : i32, i32
  }
  func.func @transform_14(%arg0: i32, %arg1: i32) -> (i32, i32) {
    %c0_i32 = arith.constant 0 : i32
    %c0_i32_0 = arith.constant 0 : i32
    %c0_i32_1 = arith.constant 0 : i32
    return %c0_i32, %c0_i32_0 : i32, i32
  }
  func.func @transform_15(%arg0: i32, %arg1: i32) -> (i32, i32, i32) {
    %c0_i32 = arith.constant 0 : i32
    %c0_i32_0 = arith.constant 0 : i32
    return %arg0, %arg1, %c0_i32 : i32, i32, i32
  }
}

</mosaic_0001>

<llo_original>
// kernel: tpu_custom_call.1
$region0: #{tpu_custom_call.1}
  #allocation0 [shape = 'u32[]', space=smem, size = 0x4, offset = 0x4, fixed_abs, tag = 'smem constant byte address 0x4 - core index']
  #allocation1 [shape = 'u32[144,128]{1,0:T(1,128)}', space=vmem, size = 0x12000, scoped, tag = 'internal scratch']
  #allocation2 [shape = 'bf16[4,8,8]{2,1,0:T(8,128)(2,1)}', space=vmem, size = 0x2000, scoped, tag = 'scratch operand']
  #allocation3 [shape = 'bf16[4,8,8]{2,1,0:T(8,128)(2,1)}', space=vmem, size = 0x2000, scoped, tag = 'scratch operand']
  %s0 = inlined_call_operand.vmem [shape: f32[2,8,32], index: 0, kind: input, shape index: {}]
  %s1 = inlined_call_operand.vmem [shape: f32[1,32], index: 1, kind: input, shape index: {}]
  %s2 = inlined_call_operand.vmem [shape: f32[1,32], index: 2, kind: input, shape index: {}]
  %s3 = inlined_call_operand.vmem [shape: bf16[32,32], index: 3, kind: input, shape index: {}]
  %s4 = inlined_call_operand.vmem [shape: f32[1,32], index: 4, kind: input, shape index: {}]
  %s5 = inlined_call_operand.vmem [shape: bf16[32,64], index: 5, kind: input, shape index: {}]
  %s6 = inlined_call_operand.vmem [shape: f32[1,64], index: 6, kind: input, shape index: {}]
  %s7 = inlined_call_operand.vmem [shape: bf16[32,32], index: 7, kind: input, shape index: {}]
  %s8 = inlined_call_operand.vmem [shape: f32[1,32], index: 8, kind: input, shape index: {}]
  %s9 = inlined_call_operand.vmem [shape: f32[1,32], index: 9, kind: input, shape index: {}]
  %s10 = inlined_call_operand.vmem [shape: f32[1,32], index: 10, kind: input, shape index: {}]
  %s11 = inlined_call_operand.vmem [shape: bf16[32,128], index: 11, kind: input, shape index: {}]
  %s12 = inlined_call_operand.hbm [shape: f32[1,128], index: 12, kind: input, shape index: {}]
  %s13 = inlined_call_operand.vmem [shape: bf16[128,32], index: 13, kind: input, shape index: {}]
  %s14 = inlined_call_operand.vmem [shape: f32[1,32], index: 14, kind: input, shape index: {}]
  %s15 = inlined_call_operand.hbm [shape: f32[2,8,32], index: 15, kind: output, shape index: {}]
  %s16 = sld [smem:[#allocation0]]
  $region101: #{tpu_custom_call.1} parent=0
    _
  %s18 = ssub.s32 1, %s16
  %s19 = scalar_select 0, %s18, %s16
  $region1: #{tpu_custom_call.1} parent=0
    #allocation4 [shape = 'u8[512]{0}', space=vmem, size = 0x400, scoped, tag = 'input window, operand 12, single buffered']
    #allocation5 [shape = 's32[2]{0}', space=sflag, size = 0x8, scoped, tag = 'scoped memory for tpu_custom_call.1']
    #allocation6 [shape = 's32[2]{0}', space=sflag, size = 0x8, scoped, tag = 'scoped memory for tpu_custom_call.1']
    #allocation7 [shape = 'u8[8192]{0}', space=vmem, size = 0x2000, scoped, tag = 'output window, operand 0']
    %20 = vsyncpa [#allocation5], 0
    %21 = vsyncpa [#allocation6], 0
    %s22 = scalar_lea.sflag [#allocation6], 1
    %23 = vsyncpa %s22, 0
    loop: start=0, step=1, limit=4
    $region2: #{tpu_custom_call.1} parent=1 // loop_pre_header
      _
    $region3: #{tpu_custom_call.1} parent=1 // loop_header
      %s25 = sphi 0, %s29
      %p26 = scmp.ge.s32.totalorder %s25, 4
      %s32 = sphi 0, %s44
      %s33 = sphi 0, %s40
      %s34 = sphi 0, %s32
      %s35 = sphi 0, %s33
      %s36 = sphi 0, %s34
      %s37 = sphi 0, %s35
      %s47 = sphi 0, %s49
      %s50 = sphi 0, %s47
      %s51 = sphi 0, %s50
      %s67 = sphi 0, %s51
      %s71 = sphi 0, %s71
      %s73 = sphi 0, %s71
      %s74 = sphi 0, %s73
      %s88 = sphi 0, %s74
      %s92 = sphi 0, %s92
      %s94 = sphi 0, %s92
      %s95 = sphi 0, %s94
      %s109 = sphi 0, %s95
      %s113 = sphi 0, %s113
      %s115 = sphi 0, %s113
      %s116 = sphi 0, %s115
      %s130 = sphi 0, %s116
      %s134 = sphi 0, %s134
      %s136 = sphi 0, %s134
      %s137 = sphi 0, %s136
      %s151 = sphi 0, %s137
      %s155 = sphi 0, %s155
      %s157 = sphi 0, %s155
      %s158 = sphi 0, %s157
      %s172 = sphi 0, %s158
      %s176 = sphi 0, %s176
      %s178 = sphi 0, %s176
      %s179 = sphi 0, %s178
      %s193 = sphi 0, %s179
      %s197 = sphi 0, %s197
      %s199 = sphi 0, %s197
      %s200 = sphi 0, %s199
      %s214 = sphi 0, %s200
      %s218 = sphi 0, %s218
      %s220 = sphi 0, %s218
      %s221 = sphi 0, %s220
      %s235 = sphi 0, %s221
      %s239 = sphi 0, %s239
      %s241 = sphi 0, %s239
      %s242 = sphi 0, %s241
      %s256 = sphi 0, %s242
      %s260 = sphi 0, %s260
      %s262 = sphi 0, %s260
      %s263 = sphi 0, %s262
      %s277 = sphi 0, %s263
      %s281 = sphi 0, %s281
      %s283 = sphi 0, %s281
      %s284 = sphi 0, %s283
      %s298 = sphi 0, %s284
      %s302 = sphi 0, %s302
      %s304 = sphi 0, %s302
      %s305 = sphi 0, %s304
      %s319 = sphi 0, %s305
      %s323 = sphi 0, %s323
      %s325 = sphi 0, %s323
      %s326 = sphi 0, %s325
      %s340 = sphi 0, %s326
      %s344 = sphi 0, %s344
      %s346 = sphi 0, %s344
      %s347 = sphi 0, %s346
      %s361 = sphi 0, %s347
      %s369 = sphi 0, %s371
      %s372 = sphi 0, %s369
      %s373 = sphi 0, %s372
      %s389 = sphi 0, %s373
    $region4: #{tpu_custom_call.1} parent=1 // loop_header_branch
      %28 = sbr.rel (%p26) target = $region8
    $region5: #{tpu_custom_call.1} parent=1 // loop_body
      %s30 = ssub.s32 %s25, 1
      %s31 = ssub.s32 %s25, 2
      %s38 = sadd.s32 1, %s33
      %p39 = scmp.ge.s32.totalorder %s38, 1
      %s40 = scalar_select %p39, 0, %s38
      %s41 = sadd.s32 1, %s32
      %s42 = scalar_select %p39, %s41, %s32
      %p43 = scmp.ge.s32.totalorder %s42, 2
      %s44 = scalar_select %p43, 0, %s42
      %s45 = ssub.s32 %s32, %s44
      %p46 = scmp.eq.s32.totalorder %s45, 0
      %s48 = sadd.s32 %s47, 1
      %s49 = scalar_select %p46, %s47, %s48
      %p52 = pneg %p46
      %p53 = scmp.eq.s32.totalorder %s25, 1
      %p54 = por %p52, %p53
      %p55 = scmp.ne.s32.totalorder %s47, %s50
      %p56 = scmp.eq.s32.totalorder %s25, 0
      %p57 = por %p55, %p56
      %p58 = scmp.ne.s32.totalorder %s47, %s50
      %p59 = scmp.eq.s32.totalorder %s30, 1
      %p60 = por %p58, %p59
      %p61 = scmp.ne.s32.totalorder %s50, %s51
      %p62 = scmp.eq.s32.totalorder %s30, 0
      %p63 = por %p61, %p62
      %p64 = scmp.ne.s32.totalorder %s50, %s51
      %p65 = scmp.eq.s32.totalorder %s31, 1
      %p66 = por %p64, %p65
      %p68 = scmp.ne.s32.totalorder %s51, %s67
      %p69 = scmp.eq.s32.totalorder %s31, 0
      %p70 = por %p68, %p69
      %s72 = sadd.s32 %s71, 1
      %p75 = scmp.eq.s32.totalorder %s25, 1
      %p76 = scmp.ne.s32.totalorder %s71, %s73
      %p77 = scmp.eq.s32.totalorder %s25, 0
      %p78 = por %p76, %p77
      %p79 = scmp.ne.s32.totalorder %s71, %s73
      %p80 = scmp.eq.s32.totalorder %s30, 1
      %p81 = por %p79, %p80
      %p82 = scmp.ne.s32.totalorder %s73, %s74
      %p83 = scmp.eq.s32.totalorder %s30, 0
      %p84 = por %p82, %p83
      %p85 = scmp.ne.s32.totalorder %s73, %s74
      %p86 = scmp.eq.s32.totalorder %s31, 1
      %p87 = por %p85, %p86
      %p89 = scmp.ne.s32.totalorder %s74, %s88
      %p90 = scmp.eq.s32.totalorder %s31, 0
      %p91 = por %p89, %p90
      %s93 = sadd.s32 %s92, 1
      %p96 = scmp.eq.s32.totalorder %s25, 1
      %p97 = scmp.ne.s32.totalorder %s92, %s94
      %p98 = scmp.eq.s32.totalorder %s25, 0
      %p99 = por %p97, %p98
      %p100 = scmp.ne.s32.totalorder %s92, %s94
      %p101 = scmp.eq.s32.totalorder %s30, 1
      %p102 = por %p100, %p101
      %p103 = scmp.ne.s32.totalorder %s94, %s95
      %p104 = scmp.eq.s32.totalorder %s30, 0
      %p105 = por %p103, %p104
      %p106 = scmp.ne.s32.totalorder %s94, %s95
      %p107 = scmp.eq.s32.totalorder %s31, 1
      %p108 = por %p106, %p107
      %p110 = scmp.ne.s32.totalorder %s95, %s109
      %p111 = scmp.eq.s32.totalorder %s31, 0
      %p112 = por %p110, %p111
      %s114 = sadd.s32 %s113, 1
      %p117 = scmp.eq.s32.totalorder %s25, 1
      %p118 = scmp.ne.s32.totalorder %s113, %s115
      %p119 = scmp.eq.s32.totalorder %s25, 0
      %p120 = por %p118, %p119
      %p121 = scmp.ne.s32.totalorder %s113, %s115
      %p122 = scmp.eq.s32.totalorder %s30, 1
      %p123 = por %p121, %p122
      %p124 = scmp.ne.s32.totalorder %s115, %s116
      %p125 = scmp.eq.s32.totalorder %s30, 0
      %p126 = por %p124, %p125
      %p127 = scmp.ne.s32.totalorder %s115, %s116
      %p128 = scmp.eq.s32.totalorder %s31, 1
      %p129 = por %p127, %p128
      %p131 = scmp.ne.s32.totalorder %s116, %s130
      %p132 = scmp.eq.s32.totalorder %s31, 0
      %p133 = por %p131, %p132
      %s135 = sadd.s32 %s134, 1
      %p138 = scmp.eq.s32.totalorder %s25, 1
      %p139 = scmp.ne.s32.totalorder %s134, %s136
      %p140 = scmp.eq.s32.totalorder %s25, 0
      %p141 = por %p139, %p140
      %p142 = scmp.ne.s32.totalorder %s134, %s136
      %p143 = scmp.eq.s32.totalorder %s30, 1
      %p144 = por %p142, %p143
      %p145 = scmp.ne.s32.totalorder %s136, %s137
      %p146 = scmp.eq.s32.totalorder %s30, 0
      %p147 = por %p145, %p146
      %p148 = scmp.ne.s32.totalorder %s136, %s137
      %p149 = scmp.eq.s32.totalorder %s31, 1
      %p150 = por %p148, %p149
      %p152 = scmp.ne.s32.totalorder %s137, %s151
      %p153 = scmp.eq.s32.totalorder %s31, 0
      %p154 = por %p152, %p153
      %s156 = sadd.s32 %s155, 1
      %p159 = scmp.eq.s32.totalorder %s25, 1
      %p160 = scmp.ne.s32.totalorder %s155, %s157
      %p161 = scmp.eq.s32.totalorder %s25, 0
      %p162 = por %p160, %p161
      %p163 = scmp.ne.s32.totalorder %s155, %s157
      %p164 = scmp.eq.s32.totalorder %s30, 1
      %p165 = por %p163, %p164
      %p166 = scmp.ne.s32.totalorder %s157, %s158
      %p167 = scmp.eq.s32.totalorder %s30, 0
      %p168 = por %p166, %p167
      %p169 = scmp.ne.s32.totalorder %s157, %s158
      %p170 = scmp.eq.s32.totalorder %s31, 1
      %p171 = por %p169, %p170
      %p173 = scmp.ne.s32.totalorder %s158, %s172
      %p174 = scmp.eq.s32.totalorder %s31, 0
      %p175 = por %p173, %p174
      %s177 = sadd.s32 %s176, 1
      %p180 = scmp.eq.s32.totalorder %s25, 1
      %p181 = scmp.ne.s32.totalorder %s176, %s178
      %p182 = scmp.eq.s32.totalorder %s25, 0
      %p183 = por %p181, %p182
      %p184 = scmp.ne.s32.totalorder %s176, %s178
      %p185 = scmp.eq.s32.totalorder %s30, 1
      %p186 = por %p184, %p185
      %p187 = scmp.ne.s32.totalorder %s178, %s179
      %p188 = scmp.eq.s32.totalorder %s30, 0
      %p189 = por %p187, %p188
      %p190 = scmp.ne.s32.totalorder %s178, %s179
      %p191 = scmp.eq.s32.totalorder %s31, 1
      %p192 = por %p190, %p191
      %p194 = scmp.ne.s32.totalorder %s179, %s193
      %p195 = scmp.eq.s32.totalorder %s31, 0
      %p196 = por %p194, %p195
      %s198 = sadd.s32 %s197, 1
      %p201 = scmp.eq.s32.totalorder %s25, 1
      %p202 = scmp.ne.s32.totalorder %s197, %s199
      %p203 = scmp.eq.s32.totalorder %s25, 0
      %p204 = por %p202, %p203
      %p205 = scmp.ne.s32.totalorder %s197, %s199
      %p206 = scmp.eq.s32.totalorder %s30, 1
      %p207 = por %p205, %p206
      %p208 = scmp.ne.s32.totalorder %s199, %s200
      %p209 = scmp.eq.s32.totalorder %s30, 0
      %p210 = por %p208, %p209
      %p211 = scmp.ne.s32.totalorder %s199, %s200
      %p212 = scmp.eq.s32.totalorder %s31, 1
      %p213 = por %p211, %p212
      %p215 = scmp.ne.s32.totalorder %s200, %s214
      %p216 = scmp.eq.s32.totalorder %s31, 0
      %p217 = por %p215, %p216
      %s219 = sadd.s32 %s218, 1
      %p222 = scmp.eq.s32.totalorder %s25, 1
      %p223 = scmp.ne.s32.totalorder %s218, %s220
      %p224 = scmp.eq.s32.totalorder %s25, 0
      %p225 = por %p223, %p224
      %p226 = scmp.ne.s32.totalorder %s218, %s220
      %p227 = scmp.eq.s32.totalorder %s30, 1
      %p228 = por %p226, %p227
      %p229 = scmp.ne.s32.totalorder %s220, %s221
      %p230 = scmp.eq.s32.totalorder %s30, 0
      %p231 = por %p229, %p230
      %p232 = scmp.ne.s32.totalorder %s220, %s221
      %p233 = scmp.eq.s32.totalorder %s31, 1
      %p234 = por %p232, %p233
      %p236 = scmp.ne.s32.totalorder %s221, %s235
      %p237 = scmp.eq.s32.totalorder %s31, 0
      %p238 = por %p236, %p237
      %s240 = sadd.s32 %s239, 1
      %p243 = scmp.eq.s32.totalorder %s25, 1
      %p244 = scmp.ne.s32.totalorder %s239, %s241
      %p245 = scmp.eq.s32.totalorder %s25, 0
      %p246 = por %p244, %p245
      %p247 = scmp.ne.s32.totalorder %s239, %s241
      %p248 = scmp.eq.s32.totalorder %s30, 1
      %p249 = por %p247, %p248
      %p250 = scmp.ne.s32.totalorder %s241, %s242
      %p251 = scmp.eq.s32.totalorder %s30, 0
      %p252 = por %p250, %p251
      %p253 = scmp.ne.s32.totalorder %s241, %s242
      %p254 = scmp.eq.s32.totalorder %s31, 1
      %p255 = por %p253, %p254
      %p257 = scmp.ne.s32.totalorder %s242, %s256
      %p258 = scmp.eq.s32.totalorder %s31, 0
      %p259 = por %p257, %p258
      %s261 = sadd.s32 %s260, 1
      %p264 = scmp.eq.s32.totalorder %s25, 1
      %p265 = scmp.ne.s32.totalorder %s260, %s262
      %p266 = scmp.eq.s32.totalorder %s25, 0
      %p267 = por %p265, %p266
      %p268 = scmp.ne.s32.totalorder %s260, %s262
      %p269 = scmp.eq.s32.totalorder %s30, 1
      %p270 = por %p268, %p269
      %p271 = scmp.ne.s32.totalorder %s262, %s263
      %p272 = scmp.eq.s32.totalorder %s30, 0
      %p273 = por %p271, %p272
      %p274 = scmp.ne.s32.totalorder %s262, %s263
      %p275 = scmp.eq.s32.totalorder %s31, 1
      %p276 = por %p274, %p275
      %p278 = scmp.ne.s32.totalorder %s263, %s277
      %p279 = scmp.eq.s32.totalorder %s31, 0
      %p280 = por %p278, %p279
      %s282 = sadd.s32 %s281, 1
      %p285 = scmp.eq.s32.totalorder %s25, 1
      %p286 = scmp.ne.s32.totalorder %s281, %s283
      %p287 = scmp.eq.s32.totalorder %s25, 0
      %p288 = por %p286, %p287
      %p289 = scmp.ne.s32.totalorder %s281, %s283
      %p290 = scmp.eq.s32.totalorder %s30, 1
      %p291 = por %p289, %p290
      %p292 = scmp.ne.s32.totalorder %s283, %s284
      %p293 = scmp.eq.s32.totalorder %s30, 0
      %p294 = por %p292, %p293
      %p295 = scmp.ne.s32.totalorder %s283, %s284
      %p296 = scmp.eq.s32.totalorder %s31, 1
      %p297 = por %p295, %p296
      %p299 = scmp.ne.s32.totalorder %s284, %s298
      %p300 = scmp.eq.s32.totalorder %s31, 0
      %p301 = por %p299, %p300
      %s303 = sadd.s32 %s302, 1
      %p306 = scmp.eq.s32.totalorder %s25, 1
      %p307 = scmp.ne.s32.totalorder %s302, %s304
      %p308 = scmp.eq.s32.totalorder %s25, 0
      %p309 = por %p307, %p308
      %p310 = scmp.ne.s32.totalorder %s302, %s304
      %p311 = scmp.eq.s32.totalorder %s30, 1
      %p312 = por %p310, %p311
      %p313 = scmp.ne.s32.totalorder %s304, %s305
      %p314 = scmp.eq.s32.totalorder %s30, 0
      %p315 = por %p313, %p314
      %p316 = scmp.ne.s32.totalorder %s304, %s305
      %p317 = scmp.eq.s32.totalorder %s31, 1
      %p318 = por %p316, %p317
      %p320 = scmp.ne.s32.totalorder %s305, %s319
      %p321 = scmp.eq.s32.totalorder %s31, 0
      %p322 = por %p320, %p321
      %s324 = sadd.s32 %s323, 1
      %p327 = scmp.eq.s32.totalorder %s25, 1
      %p328 = scmp.ne.s32.totalorder %s323, %s325
      %p329 = scmp.eq.s32.totalorder %s25, 0
      %p330 = por %p328, %p329
      %p331 = scmp.ne.s32.totalorder %s323, %s325
      %p332 = scmp.eq.s32.totalorder %s30, 1
      %p333 = por %p331, %p332
      %p334 = scmp.ne.s32.totalorder %s325, %s326
      %p335 = scmp.eq.s32.totalorder %s30, 0
      %p336 = por %p334, %p335
      %p337 = scmp.ne.s32.totalorder %s325, %s326
      %p338 = scmp.eq.s32.totalorder %s31, 1
      %p339 = por %p337, %p338
      %p341 = scmp.ne.s32.totalorder %s326, %s340
      %p342 = scmp.eq.s32.totalorder %s31, 0
      %p343 = por %p341, %p342
      %s345 = sadd.s32 %s344, 1
      %p348 = scmp.eq.s32.totalorder %s25, 1
      %p349 = scmp.ne.s32.totalorder %s344, %s346
      %p350 = scmp.eq.s32.totalorder %s25, 0
      %p351 = por %p349, %p350
      %p352 = scmp.ne.s32.totalorder %s344, %s346
      %p353 = scmp.eq.s32.totalorder %s30, 1
      %p354 = por %p352, %p353
      %p355 = scmp.ne.s32.totalorder %s346, %s347
      %p356 = scmp.eq.s32.totalorder %s30, 0
      %p357 = por %p355, %p356
      %p358 = scmp.ne.s32.totalorder %s346, %s347
      %p359 = scmp.eq.s32.totalorder %s31, 1
      %p360 = por %p358, %p359
      %p362 = scmp.ne.s32.totalorder %s347, %s361
      %p363 = scmp.eq.s32.totalorder %s31, 0
      %p364 = por %p362, %p363
      %s365 = ssub.s32 %s32, %s44
      %s366 = ssub.s32 %s33, %s40
      %s367 = sor.u32 %s365, %s366
      %p368 = scmp.eq.s32.totalorder %s367, 0
      %s370 = sadd.s32 %s369, 1
      %s371 = scalar_select %p368, %s369, %s370
      %p374 = pneg %p368
      %p375 = scmp.eq.s32.totalorder %s25, 1
      %p376 = por %p374, %p375
      %p377 = scmp.ne.s32.totalorder %s369, %s372
      %p378 = scmp.eq.s32.totalorder %s25, 0
      %p379 = por %p377, %p378
      %p380 = scmp.ne.s32.totalorder %s369, %s372
      %p381 = scmp.eq.s32.totalorder %s30, 1
      %p382 = por %p380, %p381
      %p383 = scmp.ne.s32.totalorder %s372, %s373
      %p384 = scmp.eq.s32.totalorder %s30, 0
      %p385 = por %p383, %p384
      %p386 = scmp.ne.s32.totalorder %s372, %s373
      %p387 = scmp.eq.s32.totalorder %s31, 1
      %p388 = por %p386, %p387
      %p390 = scmp.ne.s32.totalorder %s373, %s389
      %p391 = scmp.eq.s32.totalorder %s31, 0
      %p392 = por %p390, %p391
      %p393 = scmp.le.s32.totalorder 1, %s25
      %p394 = scmp.lt.s32.totalorder %s25, 3
      %p395 = pnand %p393, %p394
      %p396 = pneg %p395
      // Predicated region
      $region9: #{tpu_custom_call.1} parent=5 // pred_check
        _
      $region10: #{tpu_custom_call.1} parent=5 // pred_check_branch
        %398 = sbr.rel (%p395) target = $region12
      $region11: #{tpu_custom_call.1} parent=5 // pred_region
        %s399 = ssub.s32 %s25, 1
        // Predicated region
        $region13: #{tpu_custom_call.1} parent=11 // pred_check
          %p400 = pneg %p84
        $region14: #{tpu_custom_call.1} parent=11 // pred_check_branch
          %402 = sbr.rel (%p400) target = $region16
        $region15: #{tpu_custom_call.1} parent=11 // pred_region
          _
        $region16: #{tpu_custom_call.1} parent=11 // pred_fallthru
          _
        // Predicated region
        $region17: #{tpu_custom_call.1} parent=11 // pred_check
          %p403 = pneg %p105
        $region18: #{tpu_custom_call.1} parent=11 // pred_check_branch
          %405 = sbr.rel (%p403) target = $region20
        $region19: #{tpu_custom_call.1} parent=11 // pred_region
          _
        $region20: #{tpu_custom_call.1} parent=11 // pred_fallthru
          _
        // Predicated region
        $region21: #{tpu_custom_call.1} parent=11 // pred_check
          %p406 = pneg %p126
        $region22: #{tpu_custom_call.1} parent=11 // pred_check_branch
          %408 = sbr.rel (%p406) target = $region24
        $region23: #{tpu_custom_call.1} parent=11 // pred_region
          _
        $region24: #{tpu_custom_call.1} parent=11 // pred_fallthru
          _
        // Predicated region
        $region25: #{tpu_custom_call.1} parent=11 // pred_check
          %p409 = pneg %p147
        $region26: #{tpu_custom_call.1} parent=11 // pred_check_branch
          %411 = sbr.rel (%p409) target = $region28
        $region27: #{tpu_custom_call.1} parent=11 // pred_region
          _
        $region28: #{tpu_custom_call.1} parent=11 // pred_fallthru
          _
        // Predicated region
        $region29: #{tpu_custom_call.1} parent=11 // pred_check
          %p412 = pneg %p168
        $region30: #{tpu_custom_call.1} parent=11 // pred_check_branch
          %414 = sbr.rel (%p412) target = $region32
        $region31: #{tpu_custom_call.1} parent=11 // pred_region
          _
        $region32: #{tpu_custom_call.1} parent=11 // pred_fallthru
          _
        // Predicated region
        $region33: #{tpu_custom_call.1} parent=11 // pred_check
          %p415 = pneg %p189
        $region34: #{tpu_custom_call.1} parent=11 // pred_check_branch
          %417 = sbr.rel (%p415) target = $region36
        $region35: #{tpu_custom_call.1} parent=11 // pred_region
          _
        $region36: #{tpu_custom_call.1} parent=11 // pred_fallthru
          _
        // Predicated region
        $region37: #{tpu_custom_call.1} parent=11 // pred_check
          %p418 = pneg %p210
        $region38: #{tpu_custom_call.1} parent=11 // pred_check_branch
          %420 = sbr.rel (%p418) target = $region40
        $region39: #{tpu_custom_call.1} parent=11 // pred_region
          _
        $region40: #{tpu_custom_call.1} parent=11 // pred_fallthru
          _
        // Predicated region
        $region41: #{tpu_custom_call.1} parent=11 // pred_check
          %p421 = pneg %p231
        $region42: #{tpu_custom_call.1} parent=11 // pred_check_branch
          %423 = sbr.rel (%p421) target = $region44
        $region43: #{tpu_custom_call.1} parent=11 // pred_region
          _
        $region44: #{tpu_custom_call.1} parent=11 // pred_fallthru
          _
        // Predicated region
        $region45: #{tpu_custom_call.1} parent=11 // pred_check
          %p424 = pneg %p252
        $region46: #{tpu_custom_call.1} parent=11 // pred_check_branch
          %426 = sbr.rel (%p424) target = $region48
        $region47: #{tpu_custom_call.1} parent=11 // pred_region
          _
        $region48: #{tpu_custom_call.1} parent=11 // pred_fallthru
          _
        // Predicated region
        $region49: #{tpu_custom_call.1} parent=11 // pred_check
          %p427 = pneg %p273
        $region50: #{tpu_custom_call.1} parent=11 // pred_check_branch
          %429 = sbr.rel (%p427) target = $region52
        $region51: #{tpu_custom_call.1} parent=11 // pred_region
          _
        $region52: #{tpu_custom_call.1} parent=11 // pred_fallthru
          _
        // Predicated region
        $region53: #{tpu_custom_call.1} parent=11 // pred_check
          %p430 = pneg %p294
        $region54: #{tpu_custom_call.1} parent=11 // pred_check_branch
          %432 = sbr.rel (%p430) target = $region56
        $region55: #{tpu_custom_call.1} parent=11 // pred_region
          _
        $region56: #{tpu_custom_call.1} parent=11 // pred_fallthru
          _
        // Predicated region
        $region57: #{tpu_custom_call.1} parent=11 // pred_check
          %p433 = pneg %p315
        $region58: #{tpu_custom_call.1} parent=11 // pred_check_branch
          %435 = sbr.rel (%p433) target = $region60
        $region59: #{tpu_custom_call.1} parent=11 // pred_region
          %s437 = ssub.s32 16, 16
          %438 = vsyncadd [#allocation5], %s437
          %s440 = sshll.u32 [#allocation4], 4
          %s441 = int_to_ptr.vmem [resolvable:$true] %s440
          %443 = dma.hbm_to_vmem [thread:$0]  %s12, 16, %s441, [#allocation5]
        $region60: #{tpu_custom_call.1} parent=11 // pred_fallthru
          _
        // Predicated region
        $region61: #{tpu_custom_call.1} parent=11 // pred_check
          %p444 = pneg %p336
        $region62: #{tpu_custom_call.1} parent=11 // pred_check_branch
          %446 = sbr.rel (%p444) target = $region64
        $region63: #{tpu_custom_call.1} parent=11 // pred_region
          _
        $region64: #{tpu_custom_call.1} parent=11 // pred_fallthru
          _
        // Predicated region
        $region65: #{tpu_custom_call.1} parent=11 // pred_check
          %p447 = pneg %p357
        $region66: #{tpu_custom_call.1} parent=11 // pred_check_branch
          %449 = sbr.rel (%p447) target = $region68
        $region67: #{tpu_custom_call.1} parent=11 // pred_region
          _
        $region68: #{tpu_custom_call.1} parent=11 // pred_fallthru
          _
      $region12: #{tpu_custom_call.1} parent=5 // pred_fallthru
        _
      %p450 = scmp.lt.s32.totalorder %s25, 2
      // Predicated region
      $region69: #{tpu_custom_call.1} parent=5 // pred_check
        %p451 = pneg %p450
      $region70: #{tpu_custom_call.1} parent=5 // pred_check_branch
        %453 = sbr.rel (%p451) target = $region72
      $region71: #{tpu_custom_call.1} parent=5 // pred_region
        // Predicated region
        $region73: #{tpu_custom_call.1} parent=71 // pred_check
          %p454 = pneg %p57
        $region74: #{tpu_custom_call.1} parent=71 // pred_check_branch
          %456 = sbr.rel (%p454) target = $region76
        $region75: #{tpu_custom_call.1} parent=71 // pred_region
          %p457 = scmp.lt.s32.totalorder %s32, 1
          %s458 = scalar_select %p457, %s32, 1
          %s459 = smul.addr %s458, 8
          %s460 = scalar_lea.vmem %s0, %s459
        $region76: #{tpu_custom_call.1} parent=71 // pred_fallthru
          _
      $region72: #{tpu_custom_call.1} parent=5 // pred_fallthru
        _
      %p461 = scmp.le.s32.totalorder 1, %s25
      %p462 = scmp.lt.s32.totalorder %s25, 3
      %p463 = pnand %p461, %p462
      %p464 = pneg %p463
      // Predicated region
      $region77: #{tpu_custom_call.1} parent=5 // pred_check
        _
      $region78: #{tpu_custom_call.1} parent=5 // pred_check_branch
        %466 = sbr.rel (%p463) target = $region80
      $region79: #{tpu_custom_call.1} parent=5 // pred_region
        %s467 = ssub.s32 %s25, 1
        // Predicated region
        $region81: #{tpu_custom_call.1} parent=79 // pred_check
          %p468 = pneg %p315
        $region82: #{tpu_custom_call.1} parent=79 // pred_check_branch
          %470 = sbr.rel (%p468) target = $region84
        $region83: #{tpu_custom_call.1} parent=79 // pred_region
          %471 = dma.done [#allocation5], 16
        $region84: #{tpu_custom_call.1} parent=79 // pred_fallthru
          _
        %p472 = scmp.lt.s32.totalorder %s34, 1
        %s473 = scalar_select %p472, %s34, 1
        %s474 = smul.addr %s473, 8
        %s475 = scalar_lea.vmem %s0, %s474
        %p476 = pneg %p63
        %p477 = pneg %p60
        %p478 = pneg %p84
        %p479 = pneg %p81
        %p480 = pneg %p105
        %p481 = pneg %p102
        %p482 = pneg %p126
        %p483 = pneg %p123
        %p484 = pneg %p147
        %p485 = pneg %p144
        %p486 = pneg %p168
        %p487 = pneg %p165
        %p488 = pneg %p189
        %p489 = pneg %p186
        %p490 = pneg %p210
        %p491 = pneg %p207
        %p492 = pneg %p231
        %p493 = pneg %p228
        %p494 = pneg %p252
        %p495 = pneg %p249
        %p496 = pneg %p273
        %p497 = pneg %p270
        %p498 = pneg %p294
        %p499 = pneg %p291
        %p500 = pneg %p315
        %p501 = pneg %p312
        %p502 = pneg %p336
        %p503 = pneg %p333
        %p504 = pneg %p357
        %p505 = pneg %p354
        %p506 = pneg %p385
        %p507 = pneg %p382
        %s508 = sand.u32 %s372, 1
        %s509 = scalar_lea.sflag [#allocation6], %s508
        %s510 = sand.u32 %s372, 1
        %s511 = smul.addr %s510, 8
        %s512 = scalar_lea.vmem [#allocation7], %s511
        %p513 = scmp.lt.s32.totalorder %s34, 1
        %s514 = scalar_select %p513, %s34, 1
        %s515 = smul.addr %s514, 8
        %s516 = scalar_lea.vmem %s0, %s515
        %p518 = scmp.eq.s32.totalorder %s35, 0
        // Predicated region
        $region85: #{tpu_custom_call.1} parent=79 // pred_check
          %p519 = pneg %p518
        $region86: #{tpu_custom_call.1} parent=79 // pred_check_branch
          %521 = sbr.rel (%p519) target = $region88
        $region87: #{tpu_custom_call.1} parent=79 // pred_region
          %v522 = vld [vmem:[%s516] sm:$0xff]
          %v523 = vld [vmem:[%s1] sm:$0x1]
          %v524 = vld [vmem:[%s2] sm:$0x1]
          %vm525 = vcmask 261120
          %v526 = vsel %vm525, %v522, 0.0
          %527 = vadd.xlane.f32.xlu0 %v526
          %v528 = vpop.xlane.xlu0 %527
          %v529 = vrcp.pop 32.0
          %v530 = vmul.f32 %v528, %v529
          %v531 = vsub.f32 %v522, %v530
          %v532 = vmul.f32 %v531, %v531
          %v533 = vsel %vm525, %v532, 0.0
          %534 = vadd.xlane.f32.xlu0 %v533
          %v535 = vpop.xlane.xlu0 %534
          %v536 = vmul.f32 %v535, %v529
          %v537 = vadd.f32 %v536, 1e-05
          %v538 = vrsqrt.pop %v537
          %v539 = vmul.f32 %v531, %v538
          %v541 = vlaneseq
          %v542 = vshrl.u32 %v541, 7
          %v543 = vsub.s32 0, %v542
          %v544 = vrot.slane %v523, %v543
          %v546 = vmul.f32 %v539, %v544
          %v548 = vlaneseq
          %v549 = vshrl.u32 %v548, 7
          %v550 = vsub.s32 0, %v549
          %v551 = vrot.slane %v524, %v550
          %v553 = vadd.f32 %v546, %v551
          %v554 = vpack.c.bf16 %v553, %v553
          %v555 = vld [vmem:[%s5] sm:$0xf]
          %v556 = vld [vmem:[%s5 + $0x4] sm:$0xf]
          %v557 = vld [vmem:[%s5 + $0x8] sm:$0xf]
          %v558 = vld [vmem:[%s5 + $0xc] sm:$0xf]
          %v559 = vld [vmem:[%s6] sm:$0x1]
          %v561 = vlaneseq
          %v562 = vshrl.u32 %v561, 7
          %v563 = vsub.s32 0, %v562
          %v564 = vrot.slane %v559, %v563
          %v570 = vunpack.c.l.b16 %v555
          %v571 = vunpack.c.l.b16 %v556
          %v572 = vunpack.c.l.b16 %v557
          %v573 = vunpack.c.l.b16 %v558
          %v574 = vpack.c.b16 %v571, %v570
          %v575 = vpack.c.b16 %v573, %v572
          %v579 = vsel %vm525, %v554, 0
          %581 = vmatprep.subr.bf16.mxu0 0
          %582 = vmatpush1.bf16.msra.mxu0 0
          %583 = vmatprep.subr.bf16.mxu0 0
          %584 = vmatpush1.bf16.msra.mxu0 0
          %585 = vmatprep.subr.bf16.mxu0 0
          %586 = vmatpush1.bf16.msra.mxu0 0
          %587 = vmatprep.subr.bf16.mxu0 0
          %588 = vmatpush1.bf16.msra.mxu0 0
          %589 = vmatprep.subr.bf16.mxu0 0
          %590 = vmatpush1.bf16.msra.mxu0 0
          %591 = vmatprep.subr.bf16.mxu0 0
          %592 = vmatpush1.bf16.msra.mxu0 0
          %593 = vmatprep.subr.bf16.mxu0 0
          %594 = vmatpush1.bf16.msra.mxu0 %v575
          %595 = vmatprep.subr.bf16.mxu0 0
          %596 = vmatpush1.bf16.msra.mxu0 %v574
          %597 = vmatprep.subr.bf16.mxu0 0
          %598 = vmatpush2.bf16.msra.mxu0 0
          %599 = vmatprep.subr.bf16.mxu0 0
          %600 = vmatpush2.bf16.msra.mxu0 0
          %601 = vmatprep.subr.bf16.mxu0 0
          %602 = vmatpush2.bf16.msra.mxu0 0
          %603 = vmatprep.subr.bf16.mxu0 0
          %604 = vmatpush2.bf16.msra.mxu0 0
          %605 = vmatprep.subr.bf16.mxu0 0
          %606 = vmatpush2.bf16.msra.mxu0 0
          %607 = vmatprep.subr.bf16.mxu0 0
          %608 = vmatpush2.bf16.msra.mxu0 0
          %609 = vmatprep.subr.bf16.mxu0 0
          %610 = vmatpush2.bf16.msra.mxu0 0
          %611 = vmatprep.subr.bf16.mxu0 0
          %612 = vmatpush2.bf16.msra.mxu0 0
          %613 = vmatprep.mubr.bf16.mxu0 0
          %614 = vmatmul.mubr.bf16.gmra.mxu0 %v579
          %v615 = vpop.f32.mrf.mxu0
          %v616 = vadd.f32 %v564, %v615
          %v617 = vpop.f32.mrf.mxu0
          %v618 = vpop.f32.mrf.mxu0
          %v619 = vpop.f32.mrf.mxu0
          %620 = vdwg.mxu0
          %622 = vrot.lane.b32.xlu0 %v616, 120
          %v623 = vpop.permute.xlu0 %622
          %625 = vrot.lane.b32.xlu0 %v616, 112
          %v626 = vpop.permute.xlu0 %625
          %628 = vrot.lane.b32.xlu0 %v616, 104
          %v629 = vpop.permute.xlu0 %628
          %v631 = vcombine.low %v616, %v626
          %v632 = vcombine.high %v616, %v626
          %v634 = vunpack.c.l.s4 1983009808
          %v635 = vunpack.c.0.s8 %v634
          %v636 = vlaneseq
          %v637 = vshrl.u32 %v636, 7
          %v638 = vsub.s32 %v635, %v637
          %v639 = vrot.slane %v631, %v638
          %v641 = vunpack.c.l.s4 1983009808
          %v642 = vunpack.c.0.s8 %v641
          %v643 = vlaneseq
          %v644 = vshrl.u32 %v643, 7
          %v645 = vsub.s32 %v642, %v644
          %v646 = vrot.slane %v632, %v645
          %v647 = vcombine.low %v623, %v629
          %v648 = vcombine.high %v623, %v629
          %v650 = vunpack.c.l.s4 1983009808
          %v651 = vunpack.c.0.s8 %v650
          %v652 = vlaneseq
          %v653 = vshrl.u32 %v652, 7
          %v654 = vsub.s32 %v651, %v653
          %v655 = vrot.slane %v647, %v654
          %v657 = vunpack.c.l.s4 1983009808
          %v658 = vunpack.c.0.s8 %v657
          %v659 = vlaneseq
          %v660 = vshrl.u32 %v659, 7
          %v661 = vsub.s32 %v658, %v660
          %v662 = vrot.slane %v648, %v661
          %v663 = vcombine.low %v639, %v655
          %v664 = vcombine.high %v639, %v655
          %v666 = vunpack.c.l.s4 1934713408
          %v667 = vunpack.c.0.s8 %v666
          %v668 = vlaneseq
          %v669 = vshrl.u32 %v668, 7
          %v670 = vsub.s32 %v667, %v669
          %v671 = vrot.slane %v663, %v670
          %v673 = vunpack.c.l.s4 1934713408
          %v674 = vunpack.c.0.s8 %v673
          %v675 = vlaneseq
          %v676 = vshrl.u32 %v675, 7
          %v677 = vsub.s32 %v674, %v676
          %v678 = vrot.slane %v664, %v677
          %v679 = vcombine.low %v646, %v662
          %v680 = vcombine.high %v646, %v662
          %v682 = vunpack.c.l.s4 1934713408
          %v683 = vunpack.c.0.s8 %v682
          %v684 = vlaneseq
          %v685 = vshrl.u32 %v684, 7
          %v686 = vsub.s32 %v683, %v685
          %v687 = vrot.slane %v679, %v686
          %v689 = vunpack.c.l.s4 1934713408
          %v690 = vunpack.c.0.s8 %v689
          %v691 = vlaneseq
          %v692 = vshrl.u32 %v691, 7
          %v693 = vsub.s32 %v690, %v692
          %v694 = vrot.slane %v680, %v693
          %v695 = vcombine.high %v671, 0.0
          %v696 = vcombine.high %v678, 0.0
          %v697 = vcombine.high %v687, 0.0
          %v698 = vcombine.high %v694, 0.0
          %v699 = vcombine.low %v671, %v678
          %v701 = vunpack.c.l.s4 1983009808
          %v702 = vunpack.c.0.s8 %v701
          %v703 = vlaneseq
          %v704 = vshrl.u32 %v703, 7
          %v705 = vsub.s32 %v702, %v704
          %v706 = vrot.slane %v699, %v705
          %v707 = vcombine.low %v695, %v696
          %v709 = vunpack.c.l.s4 1983009808
          %v710 = vunpack.c.0.s8 %v709
          %v711 = vlaneseq
          %v712 = vshrl.u32 %v711, 7
          %v713 = vsub.s32 %v710, %v712
          %v714 = vrot.slane %v707, %v713
          %v715 = vcombine.low %v687, %v694
          %v717 = vunpack.c.l.s4 1983009808
          %v718 = vunpack.c.0.s8 %v717
          %v719 = vlaneseq
          %v720 = vshrl.u32 %v719, 7
          %v721 = vsub.s32 %v718, %v720
          %v722 = vrot.slane %v715, %v721
          %v723 = vcombine.low %v697, %v698
          %v725 = vunpack.c.l.s4 1983009808
          %v726 = vunpack.c.0.s8 %v725
          %v727 = vlaneseq
          %v728 = vshrl.u32 %v727, 7
          %v729 = vsub.s32 %v726, %v728
          %v730 = vrot.slane %v723, %v729
          %v731 = vcombine.low %v706, %v714
          %v732 = vcombine.high %v706, %v714
          %v734 = vunpack.c.l.s4 1934713408
          %v735 = vunpack.c.0.s8 %v734
          %v736 = vlaneseq
          %v737 = vshrl.u32 %v736, 7
          %v738 = vsub.s32 %v735, %v737
          %v739 = vrot.slane %v731, %v738
          %v741 = vunpack.c.l.s4 1934713408
          %v742 = vunpack.c.0.s8 %v741
          %v743 = vlaneseq
          %v744 = vshrl.u32 %v743, 7
          %v745 = vsub.s32 %v742, %v744
          %v746 = vrot.slane %v732, %v745
          %v747 = vcombine.low %v722, %v730
          %v748 = vcombine.high %v722, %v730
          %v750 = vunpack.c.l.s4 1934713408
          %v751 = vunpack.c.0.s8 %v750
          %v752 = vlaneseq
          %v753 = vshrl.u32 %v752, 7
          %v754 = vsub.s32 %v751, %v753
          %v755 = vrot.slane %v747, %v754
          %v757 = vunpack.c.l.s4 1934713408
          %v758 = vunpack.c.0.s8 %v757
          %v759 = vlaneseq
          %v760 = vshrl.u32 %v759, 7
          %v761 = vsub.s32 %v758, %v760
          %v762 = vrot.slane %v748, %v761
          %v763 = vcombine.low %v739, %v755
          %v764 = vcombine.high %v739, %v755
          %v765 = vcombine.low %v746, %v762
          %v766 = vcombine.high %v746, %v762
          %767 = vrot.lane.b32.xlu0 %v616, 96
          %v768 = vpop.permute.xlu0 %767
          %769 = vrot.lane.b32.xlu0 %v623, 96
          %v770 = vpop.permute.xlu0 %769
          %771 = vrot.lane.b32.xlu0 %v626, 96
          %v772 = vpop.permute.xlu0 %771
          %773 = vrot.lane.b32.xlu0 %v629, 96
          %v774 = vpop.permute.xlu0 %773
          %v779 = vcombine.low %v768, %v772
          %v780 = vcombine.high %v768, %v772
          %v782 = vunpack.c.l.s4 1983009808
          %v783 = vunpack.c.0.s8 %v782
          %v784 = vlaneseq
          %v785 = vshrl.u32 %v784, 7
          %v786 = vsub.s32 %v783, %v785
          %v787 = vrot.slane %v779, %v786
          %v789 = vunpack.c.l.s4 1983009808
          %v790 = vunpack.c.0.s8 %v789
          %v791 = vlaneseq
          %v792 = vshrl.u32 %v791, 7
          %v793 = vsub.s32 %v790, %v792
          %v794 = vrot.slane %v780, %v793
          %v795 = vcombine.low %v770, %v774
          %v796 = vcombine.high %v770, %v774
          %v798 = vunpack.c.l.s4 1983009808
          %v799 = vunpack.c.0.s8 %v798
          %v800 = vlaneseq
          %v801 = vshrl.u32 %v800, 7
          %v802 = vsub.s32 %v799, %v801
          %v803 = vrot.slane %v795, %v802
          %v805 = vunpack.c.l.s4 1983009808
          %v806 = vunpack.c.0.s8 %v805
          %v807 = vlaneseq
          %v808 = vshrl.u32 %v807, 7
          %v809 = vsub.s32 %v806, %v808
          %v810 = vrot.slane %v796, %v809
          %v811 = vcombine.low %v787, %v803
          %v812 = vcombine.high %v787, %v803
          %v814 = vunpack.c.l.s4 1934713408
          %v815 = vunpack.c.0.s8 %v814
          %v816 = vlaneseq
          %v817 = vshrl.u32 %v816, 7
          %v818 = vsub.s32 %v815, %v817
          %v819 = vrot.slane %v811, %v818
          %v821 = vunpack.c.l.s4 1934713408
          %v822 = vunpack.c.0.s8 %v821
          %v823 = vlaneseq
          %v824 = vshrl.u32 %v823, 7
          %v825 = vsub.s32 %v822, %v824
          %v826 = vrot.slane %v812, %v825
          %v827 = vcombine.low %v794, %v810
          %v828 = vcombine.high %v794, %v810
          %v830 = vunpack.c.l.s4 1934713408
          %v831 = vunpack.c.0.s8 %v830
          %v832 = vlaneseq
          %v833 = vshrl.u32 %v832, 7
          %v834 = vsub.s32 %v831, %v833
          %v835 = vrot.slane %v827, %v834
          %v837 = vunpack.c.l.s4 1934713408
          %v838 = vunpack.c.0.s8 %v837
          %v839 = vlaneseq
          %v840 = vshrl.u32 %v839, 7
          %v841 = vsub.s32 %v838, %v840
          %v842 = vrot.slane %v828, %v841
          %v843 = vcombine.high %v819, 0.0
          %v844 = vcombine.high %v826, 0.0
          %v845 = vcombine.high %v835, 0.0
          %v846 = vcombine.high %v842, 0.0
          %v847 = vcombine.low %v819, %v826
          %v849 = vunpack.c.l.s4 1983009808
          %v850 = vunpack.c.0.s8 %v849
          %v851 = vlaneseq
          %v852 = vshrl.u32 %v851, 7
          %v853 = vsub.s32 %v850, %v852
          %v854 = vrot.slane %v847, %v853
          %v855 = vcombine.low %v843, %v844
          %v857 = vunpack.c.l.s4 1983009808
          %v858 = vunpack.c.0.s8 %v857
          %v859 = vlaneseq
          %v860 = vshrl.u32 %v859, 7
          %v861 = vsub.s32 %v858, %v860
          %v862 = vrot.slane %v855, %v861
          %v863 = vcombine.low %v835, %v842
          %v865 = vunpack.c.l.s4 1983009808
          %v866 = vunpack.c.0.s8 %v865
          %v867 = vlaneseq
          %v868 = vshrl.u32 %v867, 7
          %v869 = vsub.s32 %v866, %v868
          %v870 = vrot.slane %v863, %v869
          %v871 = vcombine.low %v845, %v846
          %v873 = vunpack.c.l.s4 1983009808
          %v874 = vunpack.c.0.s8 %v873
          %v875 = vlaneseq
          %v876 = vshrl.u32 %v875, 7
          %v877 = vsub.s32 %v874, %v876
          %v878 = vrot.slane %v871, %v877
          %v879 = vcombine.low %v854, %v862
          %v880 = vcombine.high %v854, %v862
          %v882 = vunpack.c.l.s4 1934713408
          %v883 = vunpack.c.0.s8 %v882
          %v884 = vlaneseq
          %v885 = vshrl.u32 %v884, 7
          %v886 = vsub.s32 %v883, %v885
          %v887 = vrot.slane %v879, %v886
          %v889 = vunpack.c.l.s4 1934713408
          %v890 = vunpack.c.0.s8 %v889
          %v891 = vlaneseq
          %v892 = vshrl.u32 %v891, 7
          %v893 = vsub.s32 %v890, %v892
          %v894 = vrot.slane %v880, %v893
          %v895 = vcombine.low %v870, %v878
          %v896 = vcombine.high %v870, %v878
          %v898 = vunpack.c.l.s4 1934713408
          %v899 = vunpack.c.0.s8 %v898
          %v900 = vlaneseq
          %v901 = vshrl.u32 %v900, 7
          %v902 = vsub.s32 %v899, %v901
          %v903 = vrot.slane %v895, %v902
          %v905 = vunpack.c.l.s4 1934713408
          %v906 = vunpack.c.0.s8 %v905
          %v907 = vlaneseq
          %v908 = vshrl.u32 %v907, 7
          %v909 = vsub.s32 %v906, %v908
          %v910 = vrot.slane %v896, %v909
          %v911 = vcombine.low %v887, %v903
          %v912 = vcombine.high %v887, %v903
          %v913 = vcombine.low %v894, %v910
          %v914 = vcombine.high %v894, %v910
          %v915 = vpack.c.bf16 %v763, %v763
          %v916 = vpack.c.bf16 %v764, %v764
          %v917 = vpack.c.bf16 %v765, %v765
          %v918 = vpack.c.bf16 %v766, %v766
          %vm919 = vcmask 60416
          %920 = vst.msk [vmem:[#allocation2] sm:$0xf] %vm919, %v915
          %921 = vst.msk [vmem:[#allocation2 + $0x4] sm:$0xf] %vm919, %v916
          %922 = vst.msk [vmem:[#allocation2 + $0x8] sm:$0xf] %vm919, %v917
          %923 = vst.msk [vmem:[#allocation2 + $0xc] sm:$0xf] %vm919, %v918
          %v924 = vpack.c.bf16 %v911, %v911
          %v925 = vpack.c.bf16 %v912, %v912
          %v926 = vpack.c.bf16 %v913, %v913
          %v927 = vpack.c.bf16 %v914, %v914
          %928 = vst.msk [vmem:[#allocation3] sm:$0xf] %vm919, %v924
          %929 = vst.msk [vmem:[#allocation3 + $0x4] sm:$0xf] %vm919, %v925
          %930 = vst.msk [vmem:[#allocation3 + $0x8] sm:$0xf] %vm919, %v926
          %931 = vst.msk [vmem:[#allocation3 + $0xc] sm:$0xf] %vm919, %v927
        $region88: #{tpu_custom_call.1} parent=79 // pred_fallthru
          _
        %s932 = smul.u32 %s35, 8
        %s933 = scalar_lea.vmem %s516, %s932
        %v934 = vld [vmem:[%s933] sm:$0xff]
        %v935 = vld [vmem:[%s1] sm:$0x1]
        %v936 = vld [vmem:[%s2] sm:$0x1]
        %vm937 = vcmask 261120
        %v938 = vsel %vm937, %v934, 0.0
        %939 = vadd.xlane.f32.xlu0 %v938
        %v940 = vpop.xlane.xlu0 %939
        %v941 = vrcp.pop 32.0
        %v942 = vmul.f32 %v940, %v941
        %v943 = vsub.f32 %v934, %v942
        %v944 = vmul.f32 %v943, %v943
        %v945 = vsel %vm937, %v944, 0.0
        %946 = vadd.xlane.f32.xlu0 %v945
        %v947 = vpop.xlane.xlu0 %946
        %v948 = vmul.f32 %v947, %v941
        %v949 = vadd.f32 %v948, 1e-05
        %v950 = vrsqrt.pop %v949
        %v951 = vmul.f32 %v943, %v950
        %v953 = vlaneseq
        %v954 = vshrl.u32 %v953, 7
        %v955 = vsub.s32 0, %v954
        %v956 = vrot.slane %v935, %v955
        %v958 = vmul.f32 %v951, %v956
        %v960 = vlaneseq
        %v961 = vshrl.u32 %v960, 7
        %v962 = vsub.s32 0, %v961
        %v963 = vrot.slane %v936, %v962
        %v965 = vadd.f32 %v958, %v963
        %v966 = vpack.c.bf16 %v965, %v965
        %v967 = vld [vmem:[%s3] sm:$0xf]
        %v968 = vld [vmem:[%s3 + $0x4] sm:$0xf]
        %v969 = vld [vmem:[%s3 + $0x8] sm:$0xf]
        %v970 = vld [vmem:[%s3 + $0xc] sm:$0xf]
        %v971 = vld [vmem:[%s4] sm:$0x1]
        %v973 = vlaneseq
        %v974 = vshrl.u32 %v973, 7
        %v975 = vsub.s32 0, %v974
        %v976 = vrot.slane %v971, %v975
        %v982 = vunpack.c.l.b16 %v967
        %v983 = vunpack.c.l.b16 %v968
        %v984 = vunpack.c.l.b16 %v969
        %v985 = vunpack.c.l.b16 %v970
        %v986 = vpack.c.b16 %v983, %v982
        %v987 = vpack.c.b16 %v985, %v984
        %v991 = vsel %vm937, %v966, 0
        %993 = vmatprep.subr.bf16.mxu0 0
        %994 = vmatpush1.bf16.msra.mxu0 0
        %995 = vmatprep.subr.bf16.mxu0 0
        %996 = vmatpush1.bf16.msra.mxu0 0
        %997 = vmatprep.subr.bf16.mxu0 0
        %998 = vmatpush1.bf16.msra.mxu0 0
        %999 = vmatprep.subr.bf16.mxu0 0
        %1000 = vmatpush1.bf16.msra.mxu0 0
        %1001 = vmatprep.subr.bf16.mxu0 0
        %1002 = vmatpush1.bf16.msra.mxu0 0
        %1003 = vmatprep.subr.bf16.mxu0 0
        %1004 = vmatpush1.bf16.msra.mxu0 0
        %1005 = vmatprep.subr.bf16.mxu0 0
        %1006 = vmatpush1.bf16.msra.mxu0 %v987
        %1007 = vmatprep.subr.bf16.mxu0 0
        %1008 = vmatpush1.bf16.msra.mxu0 %v986
        %1009 = vmatprep.subr.bf16.mxu0 0
        %1010 = vmatpush2.bf16.msra.mxu0 0
        %1011 = vmatprep.subr.bf16.mxu0 0
        %1012 = vmatpush2.bf16.msra.mxu0 0
        %1013 = vmatprep.subr.bf16.mxu0 0
        %1014 = vmatpush2.bf16.msra.mxu0 0
        %1015 = vmatprep.subr.bf16.mxu0 0
        %1016 = vmatpush2.bf16.msra.mxu0 0
        %1017 = vmatprep.subr.bf16.mxu0 0
        %1018 = vmatpush2.bf16.msra.mxu0 0
        %1019 = vmatprep.subr.bf16.mxu0 0
        %1020 = vmatpush2.bf16.msra.mxu0 0
        %1021 = vmatprep.subr.bf16.mxu0 0
        %1022 = vmatpush2.bf16.msra.mxu0 0
        %1023 = vmatprep.subr.bf16.mxu0 0
        %1024 = vmatpush2.bf16.msra.mxu0 0
        %1025 = vmatprep.mubr.bf16.mxu0 0
        %1026 = vmatmul.mubr.bf16.gmra.mxu0 %v991
        %v1027 = vpop.f32.mrf.mxu0
        %v1028 = vadd.f32 %v976, %v1027
        %v1029 = vpop.f32.mrf.mxu0
        %v1030 = vpop.f32.mrf.mxu0
        %v1031 = vpop.f32.mrf.mxu0
        %1032 = vdwg.mxu0
        %1034 = vrot.lane.b32.xlu0 %v1028, 120
        %v1035 = vpop.permute.xlu0 %1034
        %1037 = vrot.lane.b32.xlu0 %v1028, 112
        %v1038 = vpop.permute.xlu0 %1037
        %1040 = vrot.lane.b32.xlu0 %v1028, 104
        %v1041 = vpop.permute.xlu0 %1040
        %v1043 = vcombine.low %v1028, %v1038
        %v1044 = vcombine.high %v1028, %v1038
        %v1046 = vunpack.c.l.s4 1983009808
        %v1047 = vunpack.c.0.s8 %v1046
        %v1048 = vlaneseq
        %v1049 = vshrl.u32 %v1048, 7
        %v1050 = vsub.s32 %v1047, %v1049
        %v1051 = vrot.slane %v1043, %v1050
        %v1053 = vunpack.c.l.s4 1983009808
        %v1054 = vunpack.c.0.s8 %v1053
        %v1055 = vlaneseq
        %v1056 = vshrl.u32 %v1055, 7
        %v1057 = vsub.s32 %v1054, %v1056
        %v1058 = vrot.slane %v1044, %v1057
        %v1059 = vcombine.low %v1035, %v1041
        %v1060 = vcombine.high %v1035, %v1041
        %v1062 = vunpack.c.l.s4 1983009808
        %v1063 = vunpack.c.0.s8 %v1062
        %v1064 = vlaneseq
        %v1065 = vshrl.u32 %v1064, 7
        %v1066 = vsub.s32 %v1063, %v1065
        %v1067 = vrot.slane %v1059, %v1066
        %v1069 = vunpack.c.l.s4 1983009808
        %v1070 = vunpack.c.0.s8 %v1069
        %v1071 = vlaneseq
        %v1072 = vshrl.u32 %v1071, 7
        %v1073 = vsub.s32 %v1070, %v1072
        %v1074 = vrot.slane %v1060, %v1073
        %v1075 = vcombine.low %v1051, %v1067
        %v1076 = vcombine.high %v1051, %v1067
        %v1078 = vunpack.c.l.s4 1934713408
        %v1079 = vunpack.c.0.s8 %v1078
        %v1080 = vlaneseq
        %v1081 = vshrl.u32 %v1080, 7
        %v1082 = vsub.s32 %v1079, %v1081
        %v1083 = vrot.slane %v1075, %v1082
        %v1085 = vunpack.c.l.s4 1934713408
        %v1086 = vunpack.c.0.s8 %v1085
        %v1087 = vlaneseq
        %v1088 = vshrl.u32 %v1087, 7
        %v1089 = vsub.s32 %v1086, %v1088
        %v1090 = vrot.slane %v1076, %v1089
        %v1091 = vcombine.low %v1058, %v1074
        %v1092 = vcombine.high %v1058, %v1074
        %v1094 = vunpack.c.l.s4 1934713408
        %v1095 = vunpack.c.0.s8 %v1094
        %v1096 = vlaneseq
        %v1097 = vshrl.u32 %v1096, 7
        %v1098 = vsub.s32 %v1095, %v1097
        %v1099 = vrot.slane %v1091, %v1098
        %v1101 = vunpack.c.l.s4 1934713408
        %v1102 = vunpack.c.0.s8 %v1101
        %v1103 = vlaneseq
        %v1104 = vshrl.u32 %v1103, 7
        %v1105 = vsub.s32 %v1102, %v1104
        %v1106 = vrot.slane %v1092, %v1105
        %v1107 = vcombine.high %v1083, 0.0
        %v1108 = vcombine.high %v1090, 0.0
        %v1109 = vcombine.high %v1099, 0.0
        %v1110 = vcombine.high %v1106, 0.0
        %v1111 = vcombine.low %v1083, %v1090
        %v1113 = vunpack.c.l.s4 1983009808
        %v1114 = vunpack.c.0.s8 %v1113
        %v1115 = vlaneseq
        %v1116 = vshrl.u32 %v1115, 7
        %v1117 = vsub.s32 %v1114, %v1116
        %v1118 = vrot.slane %v1111, %v1117
        %v1119 = vcombine.low %v1107, %v1108
        %v1121 = vunpack.c.l.s4 1983009808
        %v1122 = vunpack.c.0.s8 %v1121
        %v1123 = vlaneseq
        %v1124 = vshrl.u32 %v1123, 7
        %v1125 = vsub.s32 %v1122, %v1124
        %v1126 = vrot.slane %v1119, %v1125
        %v1127 = vcombine.low %v1099, %v1106
        %v1129 = vunpack.c.l.s4 1983009808
        %v1130 = vunpack.c.0.s8 %v1129
        %v1131 = vlaneseq
        %v1132 = vshrl.u32 %v1131, 7
        %v1133 = vsub.s32 %v1130, %v1132
        %v1134 = vrot.slane %v1127, %v1133
        %v1135 = vcombine.low %v1109, %v1110
        %v1137 = vunpack.c.l.s4 1983009808
        %v1138 = vunpack.c.0.s8 %v1137
        %v1139 = vlaneseq
        %v1140 = vshrl.u32 %v1139, 7
        %v1141 = vsub.s32 %v1138, %v1140
        %v1142 = vrot.slane %v1135, %v1141
        %v1143 = vcombine.low %v1118, %v1126
        %v1144 = vcombine.high %v1118, %v1126
        %v1146 = vunpack.c.l.s4 1934713408
        %v1147 = vunpack.c.0.s8 %v1146
        %v1148 = vlaneseq
        %v1149 = vshrl.u32 %v1148, 7
        %v1150 = vsub.s32 %v1147, %v1149
        %v1151 = vrot.slane %v1143, %v1150
        %v1153 = vunpack.c.l.s4 1934713408
        %v1154 = vunpack.c.0.s8 %v1153
        %v1155 = vlaneseq
        %v1156 = vshrl.u32 %v1155, 7
        %v1157 = vsub.s32 %v1154, %v1156
        %v1158 = vrot.slane %v1144, %v1157
        %v1159 = vcombine.low %v1134, %v1142
        %v1160 = vcombine.high %v1134, %v1142
        %v1162 = vunpack.c.l.s4 1934713408
        %v1163 = vunpack.c.0.s8 %v1162
        %v1164 = vlaneseq
        %v1165 = vshrl.u32 %v1164, 7
        %v1166 = vsub.s32 %v1163, %v1165
        %v1167 = vrot.slane %v1159, %v1166
        %v1169 = vunpack.c.l.s4 1934713408
        %v1170 = vunpack.c.0.s8 %v1169
        %v1171 = vlaneseq
        %v1172 = vshrl.u32 %v1171, 7
        %v1173 = vsub.s32 %v1170, %v1172
        %v1174 = vrot.slane %v1160, %v1173
        %v1175 = vcombine.low %v1151, %v1167
        %v1176 = vcombine.high %v1151, %v1167
        %v1177 = vcombine.low %v1158, %v1174
        %v1178 = vcombine.high %v1158, %v1174
        %v1179 = vpack.c.bf16 %v1175, %v1175
        %v1180 = vpack.c.bf16 %v1176, %v1176
        %v1181 = vpack.c.bf16 %v1177, %v1177
        %v1182 = vpack.c.bf16 %v1178, %v1178
        %v1183 = vld [vmem:[#allocation2] sm:$0xf]
        %v1184 = vld [vmem:[#allocation2 + $0x4] sm:$0xf]
        %v1185 = vld [vmem:[#allocation2 + $0x8] sm:$0xf]
        %v1186 = vld [vmem:[#allocation2 + $0xc] sm:$0xf]
        %vm1187 = vcmask 64512
        %v1189 = vsel %vm1187, %v1179, 0
        %v1192 = vsel %vm1187, %v1183, 0
        %1194 = vmatprep.subr.bf16.mxu0 0
        %1195 = vmatpush1.bf16.xpose.msra.mxu0 0
        %1196 = vmatprep.subr.bf16.mxu0 0
        %1197 = vmatpush1.bf16.xpose.msra.mxu0 0
        %1198 = vmatprep.subr.bf16.mxu0 0
        %1199 = vmatpush1.bf16.xpose.msra.mxu0 0
        %1200 = vmatprep.subr.bf16.mxu0 0
        %1201 = vmatpush1.bf16.xpose.msra.mxu0 0
        %1202 = vmatprep.subr.bf16.mxu0 0
        %1203 = vmatpush1.bf16.xpose.msra.mxu0 0
        %1204 = vmatprep.subr.bf16.mxu0 0
        %1205 = vmatpush1.bf16.xpose.msra.mxu0 0
        %1206 = vmatprep.subr.bf16.mxu0 0
        %1207 = vmatpush1.bf16.xpose.msra.mxu0 0
        %1208 = vmatprep.subr.bf16.mxu0 0
        %1209 = vmatpush1.bf16.xpose.msra.mxu0 %v1192
        %1210 = vmatprep.subr.bf16.mxu0 0
        %1211 = vmatpush2.bf16.xpose.msra.mxu0 0
        %1212 = vmatprep.subr.bf16.mxu0 0
        %1213 = vmatpush2.bf16.xpose.msra.mxu0 0
        %1214 = vmatprep.subr.bf16.mxu0 0
        %1215 = vmatpush2.bf16.xpose.msra.mxu0 0
        %1216 = vmatprep.subr.bf16.mxu0 0
        %1217 = vmatpush2.bf16.xpose.msra.mxu0 0
        %1218 = vmatprep.subr.bf16.mxu0 0
        %1219 = vmatpush2.bf16.xpose.msra.mxu0 0
        %1220 = vmatprep.subr.bf16.mxu0 0
        %1221 = vmatpush2.bf16.xpose.msra.mxu0 0
        %1222 = vmatprep.subr.bf16.mxu0 0
        %1223 = vmatpush2.bf16.xpose.msra.mxu0 0
        %1224 = vmatprep.subr.bf16.mxu0 0
        %1225 = vmatpush2.bf16.xpose.msra.mxu0 0
        %1226 = vmatprep.mubr.bf16.mxu0 0
        %1227 = vmatmul.mubr.bf16.gmra.mxu0 %v1189
        %v1228 = vpop.f32.mrf.mxu0
        %v1229 = vadd.f32 0.0, %v1228
        %v1230 = vpop.f32.mrf.mxu0
        %v1231 = vpop.f32.mrf.mxu0
        %v1232 = vpop.f32.mrf.mxu0
        %1233 = vdwg.mxu0
        %v1235 = vsel %vm1187, %v1180, 0
        %v1238 = vsel %vm1187, %v1184, 0
        %1240 = vmatprep.subr.bf16.mxu0 0
        %1241 = vmatpush1.bf16.xpose.msra.mxu0 0
        %1242 = vmatprep.subr.bf16.mxu0 0
        %1243 = vmatpush1.bf16.xpose.msra.mxu0 0
        %1244 = vmatprep.subr.bf16.mxu0 0
        %1245 = vmatpush1.bf16.xpose.msra.mxu0 0
        %1246 = vmatprep.subr.bf16.mxu0 0
        %1247 = vmatpush1.bf16.xpose.msra.mxu0 0
        %1248 = vmatprep.subr.bf16.mxu0 0
        %1249 = vmatpush1.bf16.xpose.msra.mxu0 0
        %1250 = vmatprep.subr.bf16.mxu0 0
        %1251 = vmatpush1.bf16.xpose.msra.mxu0 0
        %1252 = vmatprep.subr.bf16.mxu0 0
        %1253 = vmatpush1.bf16.xpose.msra.mxu0 0
        %1254 = vmatprep.subr.bf16.mxu0 0
        %1255 = vmatpush1.bf16.xpose.msra.mxu0 %v1238
        %1256 = vmatprep.subr.bf16.mxu0 0
        %1257 = vmatpush2.bf16.xpose.msra.mxu0 0
        %1258 = vmatprep.subr.bf16.mxu0 0
        %1259 = vmatpush2.bf16.xpose.msra.mxu0 0
        %1260 = vmatprep.subr.bf16.mxu0 0
        %1261 = vmatpush2.bf16.xpose.msra.mxu0 0
        %1262 = vmatprep.subr.bf16.mxu0 0
        %1263 = vmatpush2.bf16.xpose.msra.mxu0 0
        %1264 = vmatprep.subr.bf16.mxu0 0
        %1265 = vmatpush2.bf16.xpose.msra.mxu0 0
        %1266 = vmatprep.subr.bf16.mxu0 0
        %1267 = vmatpush2.bf16.xpose.msra.mxu0 0
        %1268 = vmatprep.subr.bf16.mxu0 0
        %1269 = vmatpush2.bf16.xpose.msra.mxu0 0
        %1270 = vmatprep.subr.bf16.mxu0 0
        %1271 = vmatpush2.bf16.xpose.msra.mxu0 0
        %1272 = vmatprep.mubr.bf16.mxu0 0
        %1273 = vmatmul.mubr.bf16.gmra.mxu0 %v1235
        %v1274 = vpop.f32.mrf.mxu0
        %v1275 = vadd.f32 0.0, %v1274
        %v1276 = vpop.f32.mrf.mxu0
        %v1277 = vpop.f32.mrf.mxu0
        %v1278 = vpop.f32.mrf.mxu0
        %1279 = vdwg.mxu0
        %v1281 = vsel %vm1187, %v1181, 0
        %v1284 = vsel %vm1187, %v1185, 0
        %1286 = vmatprep.subr.bf16.mxu0 0
        %1287 = vmatpush1.bf16.xpose.msra.mxu0 0
        %1288 = vmatprep.subr.bf16.mxu0 0
        %1289 = vmatpush1.bf16.xpose.msra.mxu0 0
        %1290 = vmatprep.subr.bf16.mxu0 0
        %1291 = vmatpush1.bf16.xpose.msra.mxu0 0
        %1292 = vmatprep.subr.bf16.mxu0 0
        %1293 = vmatpush1.bf16.xpose.msra.mxu0 0
        %1294 = vmatprep.subr.bf16.mxu0 0
        %1295 = vmatpush1.bf16.xpose.msra.mxu0 0
        %1296 = vmatprep.subr.bf16.mxu0 0
        %1297 = vmatpush1.bf16.xpose.msra.mxu0 0
        %1298 = vmatprep.subr.bf16.mxu0 0
        %1299 = vmatpush1.bf16.xpose.msra.mxu0 0
        %1300 = vmatprep.subr.bf16.mxu0 0
        %1301 = vmatpush1.bf16.xpose.msra.mxu0 %v1284
        %1302 = vmatprep.subr.bf16.mxu0 0
        %1303 = vmatpush2.bf16.xpose.msra.mxu0 0
        %1304 = vmatprep.subr.bf16.mxu0 0
        %1305 = vmatpush2.bf16.xpose.msra.mxu0 0
        %1306 = vmatprep.subr.bf16.mxu0 0
        %1307 = vmatpush2.bf16.xpose.msra.mxu0 0
        %1308 = vmatprep.subr.bf16.mxu0 0
        %1309 = vmatpush2.bf16.xpose.msra.mxu0 0
        %1310 = vmatprep.subr.bf16.mxu0 0
        %1311 = vmatpush2.bf16.xpose.msra.mxu0 0
        %1312 = vmatprep.subr.bf16.mxu0 0
        %1313 = vmatpush2.bf16.xpose.msra.mxu0 0
        %1314 = vmatprep.subr.bf16.mxu0 0
        %1315 = vmatpush2.bf16.xpose.msra.mxu0 0
        %1316 = vmatprep.subr.bf16.mxu0 0
        %1317 = vmatpush2.bf16.xpose.msra.mxu0 0
        %1318 = vmatprep.mubr.bf16.mxu0 0
        %1319 = vmatmul.mubr.bf16.gmra.mxu0 %v1281
        %v1320 = vpop.f32.mrf.mxu0
        %v1321 = vadd.f32 0.0, %v1320
        %v1322 = vpop.f32.mrf.mxu0
        %v1323 = vpop.f32.mrf.mxu0
        %v1324 = vpop.f32.mrf.mxu0
        %1325 = vdwg.mxu0
        %v1327 = vsel %vm1187, %v1182, 0
        %v1330 = vsel %vm1187, %v1186, 0
        %1332 = vmatprep.subr.bf16.mxu0 0
        %1333 = vmatpush1.bf16.xpose.msra.mxu0 0
        %1334 = vmatprep.subr.bf16.mxu0 0
        %1335 = vmatpush1.bf16.xpose.msra.mxu0 0
        %1336 = vmatprep.subr.bf16.mxu0 0
        %1337 = vmatpush1.bf16.xpose.msra.mxu0 0
        %1338 = vmatprep.subr.bf16.mxu0 0
        %1339 = vmatpush1.bf16.xpose.msra.mxu0 0
        %1340 = vmatprep.subr.bf16.mxu0 0
        %1341 = vmatpush1.bf16.xpose.msra.mxu0 0
        %1342 = vmatprep.subr.bf16.mxu0 0
        %1343 = vmatpush1.bf16.xpose.msra.mxu0 0
        %1344 = vmatprep.subr.bf16.mxu0 0
        %1345 = vmatpush1.bf16.xpose.msra.mxu0 0
        %1346 = vmatprep.subr.bf16.mxu0 0
        %1347 = vmatpush1.bf16.xpose.msra.mxu0 %v1330
        %1348 = vmatprep.subr.bf16.mxu0 0
        %1349 = vmatpush2.bf16.xpose.msra.mxu0 0
        %1350 = vmatprep.subr.bf16.mxu0 0
        %1351 = vmatpush2.bf16.xpose.msra.mxu0 0
        %1352 = vmatprep.subr.bf16.mxu0 0
        %1353 = vmatpush2.bf16.xpose.msra.mxu0 0
        %1354 = vmatprep.subr.bf16.mxu0 0
        %1355 = vmatpush2.bf16.xpose.msra.mxu0 0
        %1356 = vmatprep.subr.bf16.mxu0 0
        %1357 = vmatpush2.bf16.xpose.msra.mxu0 0
        %1358 = vmatprep.subr.bf16.mxu0 0
        %1359 = vmatpush2.bf16.xpose.msra.mxu0 0
        %1360 = vmatprep.subr.bf16.mxu0 0
        %1361 = vmatpush2.bf16.xpose.msra.mxu0 0
        %1362 = vmatprep.subr.bf16.mxu0 0
        %1363 = vmatpush2.bf16.xpose.msra.mxu0 0
        %1364 = vmatprep.mubr.bf16.mxu0 0
        %1365 = vmatmul.mubr.bf16.gmra.mxu0 %v1327
        %v1366 = vpop.f32.mrf.mxu0
        %v1367 = vadd.f32 0.0, %v1366
        %v1368 = vpop.f32.mrf.mxu0
        %v1369 = vpop.f32.mrf.mxu0
        %v1370 = vpop.f32.mrf.mxu0
        %1371 = vdwg.mxu0
        %v1372 = vmul.f32 %v1229, 0.35355338
        %v1373 = vmul.f32 %v1275, 0.35355338
        %v1374 = vmul.f32 %v1321, 0.35355338
        %v1375 = vmul.f32 %v1367, 0.35355338
        %v1376 = vlaneseq
        %v1377 = vshrl.u32 %v1376, 7
        %v1378 = vstv %s932
        %v1379 = vadd.s32 %v1378, %v1377
        %v1380 = vlaneseq
        %v1381 = vand.u32 %v1380, 127
        %vm1382 = vcmp.le.s32.totalorder %v1381, %v1379
        %v1383 = vsel %vm1382, 0.0, -1e+30
        %v1384 = vadd.f32 %v1372, %v1383
        %v1385 = vadd.f32 %v1373, %v1383
        %v1386 = vadd.f32 %v1374, %v1383
        %v1387 = vadd.f32 %v1375, %v1383
        %v1388 = vsel %vm1187, %v1384, -inf
        %1389 = vmax.xlane.f32.xlu0 %v1388
        %v1390 = vpop.xlane.xlu0 %1389
        %v1391 = vsel %vm1187, %v1385, -inf
        %1392 = vmax.xlane.f32.xlu0 %v1391
        %v1393 = vpop.xlane.xlu0 %1392
        %v1394 = vsel %vm1187, %v1386, -inf
        %1395 = vmax.xlane.f32.xlu0 %v1394
        %v1396 = vpop.xlane.xlu0 %1395
        %v1397 = vsel %vm1187, %v1387, -inf
        %1398 = vmax.xlane.f32.xlu0 %v1397
        %v1399 = vpop.xlane.xlu0 %1398
        %v1400 = vsub.f32 %v1384, %v1390
        %v1401 = vsub.f32 %v1385, %v1393
        %v1402 = vsub.f32 %v1386, %v1396
        %v1403 = vsub.f32 %v1387, %v1399
        %v1404 = vmul.f32 %v1400, 1.442695
        %v1405 = vpow.pop %v1404
        %v1406 = vmul.f32 %v1401, 1.442695
        %v1407 = vpow.pop %v1406
        %v1408 = vmul.f32 %v1402, 1.442695
        %v1409 = vpow.pop %v1408
        %v1410 = vmul.f32 %v1403, 1.442695
        %v1411 = vpow.pop %v1410
        %v1412 = vsel %vm1187, %v1405, 0.0
        %1413 = vadd.xlane.f32.xlu0 %v1412
        %v1414 = vpop.xlane.xlu0 %1413
        %v1415 = vsel %vm1187, %v1407, 0.0
        %1416 = vadd.xlane.f32.xlu0 %v1415
        %v1417 = vpop.xlane.xlu0 %1416
        %v1418 = vsel %vm1187, %v1409, 0.0
        %1419 = vadd.xlane.f32.xlu0 %v1418
        %v1420 = vpop.xlane.xlu0 %1419
        %v1421 = vsel %vm1187, %v1411, 0.0
        %1422 = vadd.xlane.f32.xlu0 %v1421
        %v1423 = vpop.xlane.xlu0 %1422
        %v1424 = vrcp.pop %v1414
        %v1425 = vrcp.pop %v1417
        %v1426 = vrcp.pop %v1420
        %v1427 = vrcp.pop %v1423
        %v1428 = vmul.f32 %v1405, %v1424
        %v1429 = vmul.f32 %v1407, %v1425
        %v1430 = vmul.f32 %v1409, %v1426
        %v1431 = vmul.f32 %v1411, %v1427
        %v1432 = vpack.c.bf16 %v1428, %v1428
        %v1433 = vpack.c.bf16 %v1429, %v1429
        %v1434 = vpack.c.bf16 %v1430, %v1430
        %v1435 = vpack.c.bf16 %v1431, %v1431
        %v1436 = vld [vmem:[#allocation3] sm:$0xf]
        %v1437 = vld [vmem:[#allocation3 + $0x4] sm:$0xf]
        %v1438 = vld [vmem:[#allocation3 + $0x8] sm:$0xf]
        %v1439 = vld [vmem:[#allocation3 + $0xc] sm:$0xf]
        %v1441 = vsel %vm1187, %v1432, 0
        %vm1443 = vcmask 1043456
        %v1445 = vsel %vm1443, %v1436, 0
        %1447 = vmatprep.subr.bf16.mxu0 0
        %1448 = vmatpush1.bf16.msra.mxu0 0
        %1449 = vmatprep.subr.bf16.mxu0 0
        %1450 = vmatpush1.bf16.msra.mxu0 0
        %1451 = vmatprep.subr.bf16.mxu0 0
        %1452 = vmatpush1.bf16.msra.mxu0 0
        %1453 = vmatprep.subr.bf16.mxu0 0
        %1454 = vmatpush1.bf16.msra.mxu0 0
        %1455 = vmatprep.subr.bf16.mxu0 0
        %1456 = vmatpush1.bf16.msra.mxu0 0
        %1457 = vmatprep.subr.bf16.mxu0 0
        %1458 = vmatpush1.bf16.msra.mxu0 0
        %1459 = vmatprep.subr.bf16.mxu0 0
        %1460 = vmatpush1.bf16.msra.mxu0 0
        %1461 = vmatprep.subr.bf16.mxu0 0
        %1462 = vmatpush1.bf16.msra.mxu0 %v1445
        %1463 = vmatprep.subr.bf16.mxu0 0
        %1464 = vmatpush2.bf16.msra.mxu0 0
        %1465 = vmatprep.subr.bf16.mxu0 0
        %1466 = vmatpush2.bf16.msra.mxu0 0
        %1467 = vmatprep.subr.bf16.mxu0 0
        %1468 = vmatpush2.bf16.msra.mxu0 0
        %1469 = vmatprep.subr.bf16.mxu0 0
        %1470 = vmatpush2.bf16.msra.mxu0 0
        %1471 = vmatprep.subr.bf16.mxu0 0
        %1472 = vmatpush2.bf16.msra.mxu0 0
        %1473 = vmatprep.subr.bf16.mxu0 0
        %1474 = vmatpush2.bf16.msra.mxu0 0
        %1475 = vmatprep.subr.bf16.mxu0 0
        %1476 = vmatpush2.bf16.msra.mxu0 0
        %1477 = vmatprep.subr.bf16.mxu0 0
        %1478 = vmatpush2.bf16.msra.mxu0 0
        %1479 = vmatprep.mubr.bf16.mxu0 0
        %1480 = vmatmul.mubr.bf16.gmra.mxu0 %v1441
        %v1481 = vpop.f32.mrf.mxu0
        %v1482 = vadd.f32 0.0, %v1481
        %v1483 = vpop.f32.mrf.mxu0
        %v1484 = vpop.f32.mrf.mxu0
        %v1485 = vpop.f32.mrf.mxu0
        %1486 = vdwg.mxu0
        %v1488 = vsel %vm1187, %v1433, 0
        %v1491 = vsel %vm1443, %v1437, 0
        %1493 = vmatprep.subr.bf16.mxu0 0
        %1494 = vmatpush1.bf16.msra.mxu0 0
        %1495 = vmatprep.subr.bf16.mxu0 0
        %1496 = vmatpush1.bf16.msra.mxu0 0
        %1497 = vmatprep.subr.bf16.mxu0 0
        %1498 = vmatpush1.bf16.msra.mxu0 0
        %1499 = vmatprep.subr.bf16.mxu0 0
        %1500 = vmatpush1.bf16.msra.mxu0 0
        %1501 = vmatprep.subr.bf16.mxu0 0
        %1502 = vmatpush1.bf16.msra.mxu0 0
        %1503 = vmatprep.subr.bf16.mxu0 0
        %1504 = vmatpush1.bf16.msra.mxu0 0
        %1505 = vmatprep.subr.bf16.mxu0 0
        %1506 = vmatpush1.bf16.msra.mxu0 0
        %1507 = vmatprep.subr.bf16.mxu0 0
        %1508 = vmatpush1.bf16.msra.mxu0 %v1491
        %1509 = vmatprep.subr.bf16.mxu0 0
        %1510 = vmatpush2.bf16.msra.mxu0 0
        %1511 = vmatprep.subr.bf16.mxu0 0
        %1512 = vmatpush2.bf16.msra.mxu0 0
        %1513 = vmatprep.subr.bf16.mxu0 0
        %1514 = vmatpush2.bf16.msra.mxu0 0
        %1515 = vmatprep.subr.bf16.mxu0 0
        %1516 = vmatpush2.bf16.msra.mxu0 0
        %1517 = vmatprep.subr.bf16.mxu0 0
        %1518 = vmatpush2.bf16.msra.mxu0 0
        %1519 = vmatprep.subr.bf16.mxu0 0
        %1520 = vmatpush2.bf16.msra.mxu0 0
        %1521 = vmatprep.subr.bf16.mxu0 0
        %1522 = vmatpush2.bf16.msra.mxu0 0
        %1523 = vmatprep.subr.bf16.mxu0 0
        %1524 = vmatpush2.bf16.msra.mxu0 0
        %1525 = vmatprep.mubr.bf16.mxu0 0
        %1526 = vmatmul.mubr.bf16.gmra.mxu0 %v1488
        %v1527 = vpop.f32.mrf.mxu0
        %v1528 = vadd.f32 0.0, %v1527
        %v1529 = vpop.f32.mrf.mxu0
        %v1530 = vpop.f32.mrf.mxu0
        %v1531 = vpop.f32.mrf.mxu0
        %1532 = vdwg.mxu0
        %v1534 = vsel %vm1187, %v1434, 0
        %v1537 = vsel %vm1443, %v1438, 0
        %1539 = vmatprep.subr.bf16.mxu0 0
        %1540 = vmatpush1.bf16.msra.mxu0 0
        %1541 = vmatprep.subr.bf16.mxu0 0
        %1542 = vmatpush1.bf16.msra.mxu0 0
        %1543 = vmatprep.subr.bf16.mxu0 0
        %1544 = vmatpush1.bf16.msra.mxu0 0
        %1545 = vmatprep.subr.bf16.mxu0 0
        %1546 = vmatpush1.bf16.msra.mxu0 0
        %1547 = vmatprep.subr.bf16.mxu0 0
        %1548 = vmatpush1.bf16.msra.mxu0 0
        %1549 = vmatprep.subr.bf16.mxu0 0
        %1550 = vmatpush1.bf16.msra.mxu0 0
        %1551 = vmatprep.subr.bf16.mxu0 0
        %1552 = vmatpush1.bf16.msra.mxu0 0
        %1553 = vmatprep.subr.bf16.mxu0 0
        %1554 = vmatpush1.bf16.msra.mxu0 %v1537
        %1555 = vmatprep.subr.bf16.mxu0 0
        %1556 = vmatpush2.bf16.msra.mxu0 0
        %1557 = vmatprep.subr.bf16.mxu0 0
        %1558 = vmatpush2.bf16.msra.mxu0 0
        %1559 = vmatprep.subr.bf16.mxu0 0
        %1560 = vmatpush2.bf16.msra.mxu0 0
        %1561 = vmatprep.subr.bf16.mxu0 0
        %1562 = vmatpush2.bf16.msra.mxu0 0
        %1563 = vmatprep.subr.bf16.mxu0 0
        %1564 = vmatpush2.bf16.msra.mxu0 0
        %1565 = vmatprep.subr.bf16.mxu0 0
        %1566 = vmatpush2.bf16.msra.mxu0 0
        %1567 = vmatprep.subr.bf16.mxu0 0
        %1568 = vmatpush2.bf16.msra.mxu0 0
        %1569 = vmatprep.subr.bf16.mxu0 0
        %1570 = vmatpush2.bf16.msra.mxu0 0
        %1571 = vmatprep.mubr.bf16.mxu0 0
        %1572 = vmatmul.mubr.bf16.gmra.mxu0 %v1534
        %v1573 = vpop.f32.mrf.mxu0
        %v1574 = vadd.f32 0.0, %v1573
        %v1575 = vpop.f32.mrf.mxu0
        %v1576 = vpop.f32.mrf.mxu0
        %v1577 = vpop.f32.mrf.mxu0
        %1578 = vdwg.mxu0
        %v1580 = vsel %vm1187, %v1435, 0
        %v1583 = vsel %vm1443, %v1439, 0
        %1585 = vmatprep.subr.bf16.mxu0 0
        %1586 = vmatpush1.bf16.msra.mxu0 0
        %1587 = vmatprep.subr.bf16.mxu0 0
        %1588 = vmatpush1.bf16.msra.mxu0 0
        %1589 = vmatprep.subr.bf16.mxu0 0
        %1590 = vmatpush1.bf16.msra.mxu0 0
        %1591 = vmatprep.subr.bf16.mxu0 0
        %1592 = vmatpush1.bf16.msra.mxu0 0
        %1593 = vmatprep.subr.bf16.mxu0 0
        %1594 = vmatpush1.bf16.msra.mxu0 0
        %1595 = vmatprep.subr.bf16.mxu0 0
        %1596 = vmatpush1.bf16.msra.mxu0 0
        %1597 = vmatprep.subr.bf16.mxu0 0
        %1598 = vmatpush1.bf16.msra.mxu0 0
        %1599 = vmatprep.subr.bf16.mxu0 0
        %1600 = vmatpush1.bf16.msra.mxu0 %v1583
        %1601 = vmatprep.subr.bf16.mxu0 0
        %1602 = vmatpush2.bf16.msra.mxu0 0
        %1603 = vmatprep.subr.bf16.mxu0 0
        %1604 = vmatpush2.bf16.msra.mxu0 0
        %1605 = vmatprep.subr.bf16.mxu0 0
        %1606 = vmatpush2.bf16.msra.mxu0 0
        %1607 = vmatprep.subr.bf16.mxu0 0
        %1608 = vmatpush2.bf16.msra.mxu0 0
        %1609 = vmatprep.subr.bf16.mxu0 0
        %1610 = vmatpush2.bf16.msra.mxu0 0
        %1611 = vmatprep.subr.bf16.mxu0 0
        %1612 = vmatpush2.bf16.msra.mxu0 0
        %1613 = vmatprep.subr.bf16.mxu0 0
        %1614 = vmatpush2.bf16.msra.mxu0 0
        %1615 = vmatprep.subr.bf16.mxu0 0
        %1616 = vmatpush2.bf16.msra.mxu0 0
        %1617 = vmatprep.mubr.bf16.mxu0 0
        %1618 = vmatmul.mubr.bf16.gmra.mxu0 %v1580
        %v1619 = vpop.f32.mrf.mxu0
        %v1620 = vadd.f32 0.0, %v1619
        %v1621 = vpop.f32.mrf.mxu0
        %v1622 = vpop.f32.mrf.mxu0
        %v1623 = vpop.f32.mrf.mxu0
        %1624 = vdwg.mxu0
        %v1625 = vcombine.low %v1482, %v1574
        %v1626 = vcombine.high %v1482, %v1574
        %v1628 = vunpack.c.l.s4 1983009808
        %v1629 = vunpack.c.0.s8 %v1628
        %v1630 = vlaneseq
        %v1631 = vshrl.u32 %v1630, 7
        %v1632 = vsub.s32 %v1629, %v1631
        %v1633 = vrot.slane %v1625, %v1632
        %v1635 = vunpack.c.l.s4 1983009808
        %v1636 = vunpack.c.0.s8 %v1635
        %v1637 = vlaneseq
        %v1638 = vshrl.u32 %v1637, 7
        %v1639 = vsub.s32 %v1636, %v1638
        %v1640 = vrot.slane %v1626, %v1639
        %v1641 = vcombine.low %v1528, %v1620
        %v1642 = vcombine.high %v1528, %v1620
        %v1644 = vunpack.c.l.s4 1983009808
        %v1645 = vunpack.c.0.s8 %v1644
        %v1646 = vlaneseq
        %v1647 = vshrl.u32 %v1646, 7
        %v1648 = vsub.s32 %v1645, %v1647
        %v1649 = vrot.slane %v1641, %v1648
        %v1651 = vunpack.c.l.s4 1983009808
        %v1652 = vunpack.c.0.s8 %v1651
        %v1653 = vlaneseq
        %v1654 = vshrl.u32 %v1653, 7
        %v1655 = vsub.s32 %v1652, %v1654
        %v1656 = vrot.slane %v1642, %v1655
        %v1657 = vcombine.low %v1633, %v1649
        %v1658 = vcombine.high %v1633, %v1649
        %v1660 = vunpack.c.l.s4 1934713408
        %v1661 = vunpack.c.0.s8 %v1660
        %v1662 = vlaneseq
        %v1663 = vshrl.u32 %v1662, 7
        %v1664 = vsub.s32 %v1661, %v1663
        %v1665 = vrot.slane %v1657, %v1664
        %v1667 = vunpack.c.l.s4 1934713408
        %v1668 = vunpack.c.0.s8 %v1667
        %v1669 = vlaneseq
        %v1670 = vshrl.u32 %v1669, 7
        %v1671 = vsub.s32 %v1668, %v1670
        %v1672 = vrot.slane %v1658, %v1671
        %v1673 = vcombine.low %v1640, %v1656
        %v1674 = vcombine.high %v1640, %v1656
        %v1676 = vunpack.c.l.s4 1934713408
        %v1677 = vunpack.c.0.s8 %v1676
        %v1678 = vlaneseq
        %v1679 = vshrl.u32 %v1678, 7
        %v1680 = vsub.s32 %v1677, %v1679
        %v1681 = vrot.slane %v1673, %v1680
        %v1683 = vunpack.c.l.s4 1934713408
        %v1684 = vunpack.c.0.s8 %v1683
        %v1685 = vlaneseq
        %v1686 = vshrl.u32 %v1685, 7
        %v1687 = vsub.s32 %v1684, %v1686
        %v1688 = vrot.slane %v1674, %v1687
        %v1689 = vcombine.high %v1665, 0.0
        %v1690 = vcombine.high %v1672, 0.0
        %v1691 = vcombine.high %v1681, 0.0
        %v1692 = vcombine.high %v1688, 0.0
        %v1693 = vcombine.low %v1665, %v1672
        %v1695 = vunpack.c.l.s4 1983009808
        %v1696 = vunpack.c.0.s8 %v1695
        %v1697 = vlaneseq
        %v1698 = vshrl.u32 %v1697, 7
        %v1699 = vsub.s32 %v1696, %v1698
        %v1700 = vrot.slane %v1693, %v1699
        %v1701 = vcombine.low %v1689, %v1690
        %v1703 = vunpack.c.l.s4 1983009808
        %v1704 = vunpack.c.0.s8 %v1703
        %v1705 = vlaneseq
        %v1706 = vshrl.u32 %v1705, 7
        %v1707 = vsub.s32 %v1704, %v1706
        %v1708 = vrot.slane %v1701, %v1707
        %v1709 = vcombine.low %v1681, %v1688
        %v1711 = vunpack.c.l.s4 1983009808
        %v1712 = vunpack.c.0.s8 %v1711
        %v1713 = vlaneseq
        %v1714 = vshrl.u32 %v1713, 7
        %v1715 = vsub.s32 %v1712, %v1714
        %v1716 = vrot.slane %v1709, %v1715
        %v1717 = vcombine.low %v1691, %v1692
        %v1719 = vunpack.c.l.s4 1983009808
        %v1720 = vunpack.c.0.s8 %v1719
        %v1721 = vlaneseq
        %v1722 = vshrl.u32 %v1721, 7
        %v1723 = vsub.s32 %v1720, %v1722
        %v1724 = vrot.slane %v1717, %v1723
        %v1725 = vcombine.low %v1700, %v1708
        %v1726 = vcombine.high %v1700, %v1708
        %v1728 = vunpack.c.l.s4 1934713408
        %v1729 = vunpack.c.0.s8 %v1728
        %v1730 = vlaneseq
        %v1731 = vshrl.u32 %v1730, 7
        %v1732 = vsub.s32 %v1729, %v1731
        %v1733 = vrot.slane %v1725, %v1732
        %v1735 = vunpack.c.l.s4 1934713408
        %v1736 = vunpack.c.0.s8 %v1735
        %v1737 = vlaneseq
        %v1738 = vshrl.u32 %v1737, 7
        %v1739 = vsub.s32 %v1736, %v1738
        %v1740 = vrot.slane %v1726, %v1739
        %v1741 = vcombine.low %v1716, %v1724
        %v1742 = vcombine.high %v1716, %v1724
        %v1744 = vunpack.c.l.s4 1934713408
        %v1745 = vunpack.c.0.s8 %v1744
        %v1746 = vlaneseq
        %v1747 = vshrl.u32 %v1746, 7
        %v1748 = vsub.s32 %v1745, %v1747
        %v1749 = vrot.slane %v1741, %v1748
        %v1751 = vunpack.c.l.s4 1934713408
        %v1752 = vunpack.c.0.s8 %v1751
        %v1753 = vlaneseq
        %v1754 = vshrl.u32 %v1753, 7
        %v1755 = vsub.s32 %v1752, %v1754
        %v1756 = vrot.slane %v1742, %v1755
        %v1757 = vcombine.low %v1733, %v1749
        %v1758 = vcombine.high %v1733, %v1749
        %v1759 = vcombine.low %v1740, %v1756
        %v1760 = vcombine.high %v1740, %v1756
        %1762 = vrot.lane.b32.xlu0 %v1758, 8
        %v1763 = vpop.permute.xlu0 %1762
        %1766 = vrot.lane.b32.xlu0 %v1759, 16
        %v1767 = vpop.permute.xlu0 %1766
        %1770 = vrot.lane.b32.xlu0 %v1760, 24
        %v1771 = vpop.permute.xlu0 %1770
        %v1773 = vsel %vm1187, %v1757, %v1763
        %vm1774 = vcmask 130048
        %v1775 = vsel %vm1774, %v1773, %v1767
        %vm1776 = vcmask 195584
        %v1777 = vsel %vm1776, %v1775, %v1771
        %v1778 = vpack.c.bf16 %v1777, %v1777
        %v1779 = vld [vmem:[%s7] sm:$0xf]
        %v1780 = vld [vmem:[%s7 + $0x4] sm:$0xf]
        %v1781 = vld [vmem:[%s7 + $0x8] sm:$0xf]
        %v1782 = vld [vmem:[%s7 + $0xc] sm:$0xf]
        %v1783 = vld [vmem:[%s8] sm:$0x1]
        %v1785 = vlaneseq
        %v1786 = vshrl.u32 %v1785, 7
        %v1787 = vsub.s32 0, %v1786
        %v1788 = vrot.slane %v1783, %v1787
        %v1794 = vunpack.c.l.b16 %v1779
        %v1795 = vunpack.c.l.b16 %v1780
        %v1796 = vunpack.c.l.b16 %v1781
        %v1797 = vunpack.c.l.b16 %v1782
        %v1798 = vpack.c.b16 %v1795, %v1794
        %v1799 = vpack.c.b16 %v1797, %v1796
        %v1803 = vsel %vm937, %v1778, 0
        %1805 = vmatprep.subr.bf16.mxu0 0
        %1806 = vmatpush1.bf16.msra.mxu0 0
        %1807 = vmatprep.subr.bf16.mxu0 0
        %1808 = vmatpush1.bf16.msra.mxu0 0
        %1809 = vmatprep.subr.bf16.mxu0 0
        %1810 = vmatpush1.bf16.msra.mxu0 0
        %1811 = vmatprep.subr.bf16.mxu0 0
        %1812 = vmatpush1.bf16.msra.mxu0 0
        %1813 = vmatprep.subr.bf16.mxu0 0
        %1814 = vmatpush1.bf16.msra.mxu0 0
        %1815 = vmatprep.subr.bf16.mxu0 0
        %1816 = vmatpush1.bf16.msra.mxu0 0
        %1817 = vmatprep.subr.bf16.mxu0 0
        %1818 = vmatpush1.bf16.msra.mxu0 %v1799
        %1819 = vmatprep.subr.bf16.mxu0 0
        %1820 = vmatpush1.bf16.msra.mxu0 %v1798
        %1821 = vmatprep.subr.bf16.mxu0 0
        %1822 = vmatpush2.bf16.msra.mxu0 0
        %1823 = vmatprep.subr.bf16.mxu0 0
        %1824 = vmatpush2.bf16.msra.mxu0 0
        %1825 = vmatprep.subr.bf16.mxu0 0
        %1826 = vmatpush2.bf16.msra.mxu0 0
        %1827 = vmatprep.subr.bf16.mxu0 0
        %1828 = vmatpush2.bf16.msra.mxu0 0
        %1829 = vmatprep.subr.bf16.mxu0 0
        %1830 = vmatpush2.bf16.msra.mxu0 0
        %1831 = vmatprep.subr.bf16.mxu0 0
        %1832 = vmatpush2.bf16.msra.mxu0 0
        %1833 = vmatprep.subr.bf16.mxu0 0
        %1834 = vmatpush2.bf16.msra.mxu0 0
        %1835 = vmatprep.subr.bf16.mxu0 0
        %1836 = vmatpush2.bf16.msra.mxu0 0
        %1837 = vmatprep.mubr.bf16.mxu0 0
        %1838 = vmatmul.mubr.bf16.gmra.mxu0 %v1803
        %v1839 = vpop.f32.mrf.mxu0
        %v1840 = vadd.f32 %v1788, %v1839
        %v1841 = vpop.f32.mrf.mxu0
        %v1842 = vpop.f32.mrf.mxu0
        %v1843 = vpop.f32.mrf.mxu0
        %1844 = vdwg.mxu0
        %v1845 = vadd.f32 %v934, %v1840
        %v1846 = vld [vmem:[%s9] sm:$0x1]
        %v1847 = vld [vmem:[%s10] sm:$0x1]
        %v1848 = vsel %vm937, %v1845, 0.0
        %1849 = vadd.xlane.f32.xlu0 %v1848
        %v1850 = vpop.xlane.xlu0 %1849
        %v1851 = vmul.f32 %v1850, %v941
        %v1852 = vsub.f32 %v1845, %v1851
        %v1853 = vmul.f32 %v1852, %v1852
        %v1854 = vsel %vm937, %v1853, 0.0
        %1855 = vadd.xlane.f32.xlu0 %v1854
        %v1856 = vpop.xlane.xlu0 %1855
        %v1857 = vmul.f32 %v1856, %v941
        %v1858 = vadd.f32 %v1857, 1e-05
        %v1859 = vrsqrt.pop %v1858
        %v1860 = vmul.f32 %v1852, %v1859
        %v1862 = vlaneseq
        %v1863 = vshrl.u32 %v1862, 7
        %v1864 = vsub.s32 0, %v1863
        %v1865 = vrot.slane %v1846, %v1864
        %v1867 = vmul.f32 %v1860, %v1865
        %v1869 = vlaneseq
        %v1870 = vshrl.u32 %v1869, 7
        %v1871 = vsub.s32 0, %v1870
        %v1872 = vrot.slane %v1847, %v1871
        %v1874 = vadd.f32 %v1867, %v1872
        %v1875 = vpack.c.bf16 %v1874, %v1874
        %v1876 = vld [vmem:[%s11] sm:$0xf]
        %v1877 = vld [vmem:[%s11 + $0x4] sm:$0xf]
        %v1878 = vld [vmem:[%s11 + $0x8] sm:$0xf]
        %v1879 = vld [vmem:[%s11 + $0xc] sm:$0xf]
        %v1880 = vld [vmem:[#allocation4] sm:$0x1]
        %v1882 = vlaneseq
        %v1883 = vshrl.u32 %v1882, 7
        %v1884 = vsub.s32 0, %v1883
        %v1885 = vrot.slane %v1880, %v1884
        %v1891 = vunpack.c.l.b16 %v1876
        %v1892 = vunpack.c.l.b16 %v1877
        %v1893 = vunpack.c.l.b16 %v1878
        %v1894 = vunpack.c.l.b16 %v1879
        %v1895 = vpack.c.b16 %v1892, %v1891
        %v1896 = vpack.c.b16 %v1894, %v1893
        %v1900 = vsel %vm937, %v1875, 0
        %1902 = vmatprep.subr.bf16.mxu0 0
        %1903 = vmatpush1.bf16.msra.mxu0 0
        %1904 = vmatprep.subr.bf16.mxu0 0
        %1905 = vmatpush1.bf16.msra.mxu0 0
        %1906 = vmatprep.subr.bf16.mxu0 0
        %1907 = vmatpush1.bf16.msra.mxu0 0
        %1908 = vmatprep.subr.bf16.mxu0 0
        %1909 = vmatpush1.bf16.msra.mxu0 0
        %1910 = vmatprep.subr.bf16.mxu0 0
        %1911 = vmatpush1.bf16.msra.mxu0 0
        %1912 = vmatprep.subr.bf16.mxu0 0
        %1913 = vmatpush1.bf16.msra.mxu0 0
        %1914 = vmatprep.subr.bf16.mxu0 0
        %1915 = vmatpush1.bf16.msra.mxu0 %v1896
        %1916 = vmatprep.subr.bf16.mxu0 0
        %1917 = vmatpush1.bf16.msra.mxu0 %v1895
        %1918 = vmatprep.subr.bf16.mxu0 0
        %1919 = vmatpush2.bf16.msra.mxu0 0
        %1920 = vmatprep.subr.bf16.mxu0 0
        %1921 = vmatpush2.bf16.msra.mxu0 0
        %1922 = vmatprep.subr.bf16.mxu0 0
        %1923 = vmatpush2.bf16.msra.mxu0 0
        %1924 = vmatprep.subr.bf16.mxu0 0
        %1925 = vmatpush2.bf16.msra.mxu0 0
        %1926 = vmatprep.subr.bf16.mxu0 0
        %1927 = vmatpush2.bf16.msra.mxu0 0
        %1928 = vmatprep.subr.bf16.mxu0 0
        %1929 = vmatpush2.bf16.msra.mxu0 0
        %1930 = vmatprep.subr.bf16.mxu0 0
        %1931 = vmatpush2.bf16.msra.mxu0 0
        %1932 = vmatprep.subr.bf16.mxu0 0
        %1933 = vmatpush2.bf16.msra.mxu0 0
        %1934 = vmatprep.mubr.bf16.mxu0 0
        %1935 = vmatmul.mubr.bf16.gmra.mxu0 %v1900
        %v1936 = vpop.f32.mrf.mxu0
        %v1937 = vadd.f32 %v1885, %v1936
        %v1938 = vpop.f32.mrf.mxu0
        %v1939 = vpop.f32.mrf.mxu0
        %v1940 = vpop.f32.mrf.mxu0
        %1941 = vdwg.mxu0
        %v1942 = vmul.f32 %v1937, 0.5
        %v1943 = vmul.f32 %v1937, 0.044715
        %v1944 = vmul.f32 %v1943, %v1937
        %v1945 = vmul.f32 %v1944, %v1937
        %v1946 = vadd.f32 %v1937, %v1945
        %v1947 = vmul.f32 %v1946, 0.7978846
        %v1948 = vtanh.pop %v1947
        %v1949 = vadd.f32 %v1948, 1.0
        %v1950 = vmul.f32 %v1942, %v1949
        %v1951 = vpack.c.bf16 %v1950, %v1950
        %v1952 = vld [vmem:[%s13] sm:$0xf]
        %v1953 = vld [vmem:[%s13 + $0x4] sm:$0xf]
        %v1954 = vld [vmem:[%s13 + $0x8] sm:$0xf]
        %v1955 = vld [vmem:[%s13 + $0xc] sm:$0xf]
        %v1956 = vld [vmem:[%s13 + $0x10] sm:$0xf]
        %v1957 = vld [vmem:[%s13 + $0x14] sm:$0xf]
        %v1958 = vld [vmem:[%s13 + $0x18] sm:$0xf]
        %v1959 = vld [vmem:[%s13 + $0x1c] sm:$0xf]
        %v1960 = vld [vmem:[%s13 + $0x20] sm:$0xf]
        %v1961 = vld [vmem:[%s13 + $0x24] sm:$0xf]
        %v1962 = vld [vmem:[%s13 + $0x28] sm:$0xf]
        %v1963 = vld [vmem:[%s13 + $0x2c] sm:$0xf]
        %v1964 = vld [vmem:[%s13 + $0x30] sm:$0xf]
        %v1965 = vld [vmem:[%s13 + $0x34] sm:$0xf]
        %v1966 = vld [vmem:[%s13 + $0x38] sm:$0xf]
        %v1967 = vld [vmem:[%s13 + $0x3c] sm:$0xf]
        %v1968 = vld [vmem:[%s14] sm:$0x1]
        %v1970 = vlaneseq
        %v1971 = vshrl.u32 %v1970, 7
        %v1972 = vsub.s32 0, %v1971
        %v1973 = vrot.slane %v1968, %v1972
        %v1991 = vunpack.c.l.b16 %v1952
        %v1992 = vunpack.c.l.b16 %v1953
        %v1993 = vunpack.c.l.b16 %v1954
        %v1994 = vunpack.c.l.b16 %v1955
        %v1995 = vunpack.c.l.b16 %v1956
        %v1996 = vunpack.c.l.b16 %v1957
        %v1997 = vunpack.c.l.b16 %v1958
        %v1998 = vunpack.c.l.b16 %v1959
        %v1999 = vunpack.c.l.b16 %v1960
        %v2000 = vunpack.c.l.b16 %v1961
        %v2001 = vunpack.c.l.b16 %v1962
        %v2002 = vunpack.c.l.b16 %v1963
        %v2003 = vunpack.c.l.b16 %v1964
        %v2004 = vunpack.c.l.b16 %v1965
        %v2005 = vunpack.c.l.b16 %v1966
        %v2006 = vunpack.c.l.b16 %v1967
        %v2007 = vpack.c.b16 %v1992, %v1991
        %v2008 = vpack.c.b16 %v1994, %v1993
        %v2009 = vpack.c.b16 %v1996, %v1995
        %v2010 = vpack.c.b16 %v1998, %v1997
        %v2011 = vpack.c.b16 %v2000, %v1999
        %v2012 = vpack.c.b16 %v2002, %v2001
        %v2013 = vpack.c.b16 %v2004, %v2003
        %v2014 = vpack.c.b16 %v2006, %v2005
        %2023 = vmatprep.subr.bf16.mxu0 0
        %2024 = vmatpush1.bf16.msra.mxu0 %v2014
        %2025 = vmatprep.subr.bf16.mxu0 0
        %2026 = vmatpush1.bf16.msra.mxu0 %v2013
        %2027 = vmatprep.subr.bf16.mxu0 0
        %2028 = vmatpush1.bf16.msra.mxu0 %v2012
        %2029 = vmatprep.subr.bf16.mxu0 0
        %2030 = vmatpush1.bf16.msra.mxu0 %v2011
        %2031 = vmatprep.subr.bf16.mxu0 0
        %2032 = vmatpush1.bf16.msra.mxu0 %v2010
        %2033 = vmatprep.subr.bf16.mxu0 0
        %2034 = vmatpush1.bf16.msra.mxu0 %v2009
        %2035 = vmatprep.subr.bf16.mxu0 0
        %2036 = vmatpush1.bf16.msra.mxu0 %v2008
        %2037 = vmatprep.subr.bf16.mxu0 0
        %2038 = vmatpush1.bf16.msra.mxu0 %v2007
        %2039 = vmatprep.subr.bf16.mxu0 0
        %2040 = vmatpush2.bf16.msra.mxu0 0
        %2041 = vmatprep.subr.bf16.mxu0 0
        %2042 = vmatpush2.bf16.msra.mxu0 0
        %2043 = vmatprep.subr.bf16.mxu0 0
        %2044 = vmatpush2.bf16.msra.mxu0 0
        %2045 = vmatprep.subr.bf16.mxu0 0
        %2046 = vmatpush2.bf16.msra.mxu0 0
        %2047 = vmatprep.subr.bf16.mxu0 0
        %2048 = vmatpush2.bf16.msra.mxu0 0
        %2049 = vmatprep.subr.bf16.mxu0 0
        %2050 = vmatpush2.bf16.msra.mxu0 0
        %2051 = vmatprep.subr.bf16.mxu0 0
        %2052 = vmatpush2.bf16.msra.mxu0 0
        %2053 = vmatprep.subr.bf16.mxu0 0
        %2054 = vmatpush2.bf16.msra.mxu0 0
        %2055 = vmatprep.mubr.bf16.mxu0 0
        %2056 = vmatmul.mubr.bf16.gmra.mxu0 %v1951
        %v2057 = vpop.f32.mrf.mxu0
        %v2058 = vadd.f32 %v1973, %v2057
        %v2059 = vpop.f32.mrf.mxu0
        %v2060 = vpop.f32.mrf.mxu0
        %v2061 = vpop.f32.mrf.mxu0
        %2062 = vdwg.mxu0
        %v2063 = vadd.f32 %v1845, %v2058
        %2064 = vst.msk [vmem:[%s512] sm:$0xff] %vm937, %v2063
        %s2065 = sand.u32 %s372, 1
        %s2066 = scalar_lea.sflag [#allocation6], %s2065
        %s2067 = sand.u32 %s372, 1
        %s2068 = smul.addr %s2067, 8
        %s2069 = scalar_lea.vmem [#allocation7], %s2068
        // Predicated region
        $region89: #{tpu_custom_call.1} parent=79 // pred_check
          %p2070 = pneg %p382
        $region90: #{tpu_custom_call.1} parent=79 // pred_check_branch
          %2072 = sbr.rel (%p2070) target = $region92
        $region91: #{tpu_custom_call.1} parent=79 // pred_region
          %s2074 = ssub.s32 128, 128
          %2075 = vsyncadd %s2066, %s2074
          %s2076 = sadd.s32 %s35, %s34
          %s2077 = smul.addr %s2076, 128
          %s2078 = scalar_lea.hbm %s15, %s2077
          %s2080 = sshll.u32 %s2069, 4
          %s2081 = int_to_ptr.vmem [resolvable:$true] %s2080
          %2083 = dma.vmem_to_hbm [thread:$0]  %s2081, 128, %s2078, %s2066
        $region92: #{tpu_custom_call.1} parent=79 // pred_fallthru
          _
      $region80: #{tpu_custom_call.1} parent=5 // pred_fallthru
        _
      %p2084 = scmp.le.s32.totalorder 2, %s25
      // Predicated region
      $region93: #{tpu_custom_call.1} parent=5 // pred_check
        %p2085 = pneg %p2084
      $region94: #{tpu_custom_call.1} parent=5 // pred_check_branch
        %2087 = sbr.rel (%p2085) target = $region96
      $region95: #{tpu_custom_call.1} parent=5 // pred_region
        %s2088 = ssub.s32 %s25, 2
        // Predicated region
        $region97: #{tpu_custom_call.1} parent=95 // pred_check
          %p2089 = pneg %p388
        $region98: #{tpu_custom_call.1} parent=95 // pred_check_branch
          %2091 = sbr.rel (%p2089) target = $region100
        $region99: #{tpu_custom_call.1} parent=95 // pred_region
          %s2092 = sand.u32 %s373, 1
          %s2093 = scalar_lea.sflag [#allocation6], %s2092
          %s2094 = sand.u32 %s373, 1
          %s2095 = smul.addr %s2094, 8
          %s2096 = scalar_lea.vmem [#allocation7], %s2095
          %2097 = dma.done %s2093, 128
        $region100: #{tpu_custom_call.1} parent=95 // pred_fallthru
          _
      $region96: #{tpu_custom_call.1} parent=5 // pred_fallthru
        _
    $region6: #{tpu_custom_call.1} parent=1 // loop_footer
      %s29 = sadd.s32 1, %s25
    $region7: #{tpu_custom_call.1} parent=1 // loop_footer_branch
      %24 = sbr.rel target = $region3
    $region8: #{tpu_custom_call.1} parent=1 // loop_exit
      _
    %2098 = vsyncpa [#allocation5], 1
    %s2099 = scalar_lea.sflag [#allocation5], 1
    %2100 = vsyncpa %s2099, 1
    %2101 = vsyncpa [#allocation6], 1
    %s2102 = scalar_lea.sflag [#allocation6], 1
    %2103 = vsyncpa %s2102, 1

</llo_original>
